<compile_context>
chip_gen: v7x
topology: tpu7x:2x2x1
jax: 0.10.0
libtpu: 0.0.40
codegen_flags: <defaults>
</compile_context>

<pallas_src>
import functools

import jax
import jax.numpy as jnp
from jax import lax
from jax.experimental import pallas as pl
from jax.experimental.pallas import tpu as pltpu


def _conv_bn_relu_kernel(x_ref, w_ref, scale_ref, shift_ref, o_ref, acc_ref,
                         *, n_chunks, kh_chunk, kw_size, th, wo, cin, exact):
    """One grid step == one output row tile of one image.

    x_ref:     (1, Cin, 1, TH+KH-1, Wp)            halo row window (padded input)
    w_ref:     (n_chunks, Cout, kh_chunk*KW*Cin)   reordered conv weights
    scale_ref: (Cout, 1) f32                       BN scale (1.0 if no BN)
    shift_ref: (Cout, 1) f32                       folded BN/bias shift
    o_ref:     (1, Cout, TH*Wo)                    output row tile (lane dim = TH*Wo)
    acc_ref:   (Cout, TH*Wo) f32                   VMEM scratch accumulator
    """
    xr = x_ref[0, :, 0, :, :]                      # (Cin, TH+KH-1, Wp)
    prec = lax.Precision.HIGHEST if exact else None

    for c in range(n_chunks):
        # Build the (partial) im2col patch for this KH chunk: concatenate the
        # shifted tap windows along the contraction axis -> one MXU matmul.
        taps = []
        for dkh in range(kh_chunk):
            kh_abs = c * kh_chunk + dkh
            for kw_i in range(kw_size):
                taps.append(
                    xr[:, kh_abs:kh_abs + th, kw_i:kw_i + wo]
                    .reshape(cin, th * wo))
        patch = taps[0] if len(taps) == 1 else jnp.concatenate(taps, axis=0)
        part = jnp.dot(w_ref[c], patch,
                       preferred_element_type=jnp.float32, precision=prec)
        if c == 0:
            acc_ref[...] = part                    # init (no separate zeroing)
        else:
            acc_ref[...] += part                   # accumulate in VMEM scratch

    # f32 epilogue: per-channel affine (BN scale applied here for precision),
    # then ReLU, then cast at the store.
    y = acc_ref[...] * scale_ref[...] + shift_ref[...]
    o_ref[0, :, :] = jnp.maximum(y, 0.0).astype(o_ref.dtype)


def _pick_row_tile(ho, wo, n, tile_bytes, budget):
    """Largest TH dividing Ho with lane-dense output tiles (TH*Wo % 128 == 0)
    whose working set fits `budget`, preferring >= 8 total grid steps
    (pipelining + both v7x TensorCores) and sublane-aligned TH."""
    lane_ok = [d for d in range(1, ho + 1)
               if ho % d == 0 and (d * wo) % 128 == 0]
    if not lane_ok:
        return ho                                  # full-image tile (block == full dims)
    fit = [d for d in lane_ok if tile_bytes(d) <= budget]
    cands = fit if fit else [min(lane_ok)]

    def score(d):
        steps = n * (ho // d)
        return (min(steps, 8), 1 if d % 8 == 0 else 0, d)

    return max(cands, key=score)


def conv_block_forward(x_nchw, weight_oihw, bias,
                       bn_gamma, bn_beta, bn_mean, bn_var,
                       *, padding, do_batch_norm, stride=1, eps=1e-5,
                       compute_dtype=jnp.bfloat16, out_dtype=None):
    """Equivalent of ConvBlock.forward (inference) for stride=1 convolutions."""
    assert stride == 1, "only stride=1 is supported"  # TODO(synk): general stride
    if out_dtype is None:
        out_dtype = compute_dtype                  # bf16 output halves HBM writeback
    n, cin, h, w = x_nchw.shape
    cout, cin_w, kh, kw = weight_oihw.shape
    assert cin == cin_w

    hp, wp = h + 2 * padding, w + 2 * padding
    ho, wo = hp - kh + 1, wp - kw + 1
    kdim = kh * kw * cin

    in_item = jnp.dtype(compute_dtype).itemsize
    out_item = jnp.dtype(out_dtype).itemsize
    exact = jnp.dtype(compute_dtype) == jnp.dtype(jnp.float32)

    # im2col split: deep contraction -> KH accumulating matmuls; small Cin ->
    # single concatenated patch (avoid running the MXU K-depth mostly empty).
    split_kh = (kw * cin) >= 128
    kh_chunk = 1 if split_kh else kh
    n_chunks = kh // kh_chunk
    kchunk = kh_chunk * kw * cin

    # --- generation-aware VMEM budget --------------------------------------
    phys_vmem = 64 * 1024 * 1024                   # conservative (v7x per-TC)
    try:
        phys_vmem = int(getattr(pltpu.get_tpu_info(),
                                "vmem_capacity_bytes", phys_vmem))
    except Exception:
        pass
    vmem_cap = max(phys_vmem - 12 * 1024 * 1024, 8 * 1024 * 1024)

    def tile_bytes(th_):
        hl = th_ + kh - 1
        return (2 * cin * hl * wp * in_item            # dbl-buffered input window
                + 2 * cout * th_ * wo * out_item       # dbl-buffered output tile
                + 2 * n_chunks * cout * kchunk * in_item   # weights
                + cout * th_ * wo * 4                  # f32 accumulator scratch
                + 2 * kchunk * th_ * wo * in_item      # im2col patch + tap temps
                + cout * th_ * wo * 4                  # f32 epilogue temp
                + 16 * cout)                           # scale / shift

    th = _pick_row_tile(ho, wo, n, tile_bytes,
                        min(vmem_cap, 40 * 1024 * 1024))
    nrt = ho // th
    halo = th + kh - 1

    # --- glue (plain JAX): cast + zero-pad, then gather per-tile halo row
    #     windows so the kernel's input is a plain Blocked tile. ---
    x_pad = jnp.pad(x_nchw.astype(compute_dtype),
                    ((0, 0), (0, 0), (padding, padding), (padding, padding)))
    if nrt == 1:
        x_win = x_pad.reshape(n, cin, 1, hp, wp)       # halo == hp
    else:
        row_idx = (jnp.arange(nrt)[:, None] * th
                   + jnp.arange(halo)[None, :]).reshape(-1)
        x_win = jnp.take(x_pad, row_idx, axis=2).reshape(n, cin, nrt, halo, wp)

    # --- fold conv bias + eval-mode BN into per-channel (scale, shift). ---
    if bias is None:
        bias = jnp.zeros((cout,), jnp.float32)
    bias = bias.astype(jnp.float32)
    if do_batch_norm:
        scale = bn_gamma.astype(jnp.float32) / jnp.sqrt(
            bn_var.astype(jnp.float32) + eps)
        shift = bn_beta.astype(jnp.float32) + (
            bias - bn_mean.astype(jnp.float32)) * scale
    else:
        scale = jnp.ones((cout,), jnp.float32)
        shift = bias
    scale = scale.reshape(cout, 1)
    shift = shift.reshape(cout, 1)

    # Weights as (n_chunks, Cout, kh_chunk*KW*Cin); contraction ordered
    # (kh, kw, cin) to match the kernel's tap-concatenation order.
    w3 = jnp.transpose(weight_oihw.astype(jnp.float32), (0, 2, 3, 1))
    w3 = w3.reshape(cout, n_chunks, kchunk).transpose(1, 0, 2)
    w3 = w3.astype(compute_dtype)

    kernel = functools.partial(
        _conv_bn_relu_kernel, n_chunks=n_chunks, kh_chunk=kh_chunk,
        kw_size=kw, th=th, wo=wo, cin=cin, exact=exact)

    vmem_est = tile_bytes(th)
    cp_kwargs = dict(dimension_semantics=("parallel", "parallel"))
    if vmem_est > 8 * 1024 * 1024:
        # Raise the scoped-VMEM limit only when needed, never above the
        # chip's physical VMEM minus headroom (v7x has only 64 MiB).
        cp_kwargs["vmem_limit_bytes"] = int(
            min(max(2 * vmem_est, 32 * 1024 * 1024), vmem_cap))

    cost = pl.CostEstimate(
        flops=2 * n * cout * kdim * ho * wo,
        bytes_accessed=int(x_win.size * in_item + w3.size * in_item
                           + n * cout * ho * wo * out_item + 8 * cout),
        transcendentals=0)

    out = pl.pallas_call(
        kernel,
        out_shape=jax.ShapeDtypeStruct((n, cout, ho * wo), out_dtype),
        grid_spec=pltpu.PrefetchScalarGridSpec(
            num_scalar_prefetch=0,
            grid=(n, nrt),
            in_specs=[
                # halo row window: only TH+KH-1 input rows resident per step
                pl.BlockSpec((1, cin, 1, halo, wp),
                             lambda b, r: (b, 0, r, 0, 0)),
                pl.BlockSpec((n_chunks, cout, kchunk),
                             lambda b, r: (0, 0, 0)),
                pl.BlockSpec((cout, 1), lambda b, r: (0, 0)),
                pl.BlockSpec((cout, 1), lambda b, r: (0, 0)),
            ],
            out_specs=pl.BlockSpec((1, cout, th * wo), lambda b, r: (b, 0, r)),
            scratch_shapes=[pltpu.VMEM((cout, th * wo), jnp.float32)],
        ),
        compiler_params=pltpu.CompilerParams(**cp_kwargs),
        cost_estimate=cost,
    )(x_win, w3, scale, shift)

    # Free reshape (no transpose): output is already channel-major (NCHW).
    return out.reshape(n, cout, ho, wo)


def _reference(x_nchw, weight_oihw, bias,
               bn_gamma, bn_beta, bn_mean, bn_var,
               *, padding, do_batch_norm, eps=1e-5):
    y = lax.conv_general_dilated(
        x_nchw.astype(jnp.float32), weight_oihw.astype(jnp.float32),
        window_strides=(1, 1),
        padding=[(padding, padding), (padding, padding)],
        dimension_numbers=("NCHW", "OIHW", "NCHW"),
        precision=lax.Precision.HIGHEST)
    y = y + bias.reshape(1, -1, 1, 1)
    if do_batch_norm:
        y = (y - bn_mean.reshape(1, -1, 1, 1)) / jnp.sqrt(
            bn_var.reshape(1, -1, 1, 1) + eps)
        y = y * bn_gamma.reshape(1, -1, 1, 1) + bn_beta.reshape(1, -1, 1, 1)
    return jnp.maximum(y, 0.0)


if __name__ == "__main__":
    def run_case(key, n, cin, h, w, cout, kh, kw, pad, do_bn):
        kx, kw_, kb, kg, kbe, km, kv = jax.random.split(key, 7)
        x = jax.random.normal(kx, (n, cin, h, w), jnp.float32)
        weight = jax.random.normal(kw_, (cout, cin, kh, kw), jnp.float32) * 0.1
        bias = jax.random.normal(kb, (cout,), jnp.float32) * 0.1
        gamma = 1.0 + 0.1 * jax.random.normal(kg, (cout,), jnp.float32)
        beta = 0.1 * jax.random.normal(kbe, (cout,), jnp.float32)
        mean = 0.1 * jax.random.normal(km, (cout,), jnp.float32)
        var = jnp.abs(jax.random.normal(kv, (cout,), jnp.float32)) + 0.5

        ref = _reference(x, weight, bias, gamma, beta, mean, var,
                         padding=pad, do_batch_norm=do_bn)

        # Exact-precision path (f32 compute/output) -> tight check.
        out_f32 = conv_block_forward(x, weight, bias, gamma, beta, mean, var,
                                     padding=pad, do_batch_norm=do_bn,
                                     compute_dtype=jnp.float32)
        out_f32 = jax.block_until_ready(out_f32)
        assert out_f32.shape == (n, cout, h, w), out_f32.shape
        assert jnp.allclose(out_f32, ref, atol=1e-3, rtol=1e-3), float(
            jnp.max(jnp.abs(out_f32 - ref)))

        # Production path (bf16 compute + bf16 output) -> loose check.
        out_bf16 = conv_block_forward(x, weight, bias, gamma, beta, mean, var,
                                      padding=pad, do_batch_norm=do_bn,
                                      compute_dtype=jnp.bfloat16)
        out_bf16 = jax.block_until_ready(out_bf16)
        assert out_bf16.shape == (n, cout, h, w), out_bf16.shape
        assert jnp.allclose(out_bf16.astype(jnp.float32), ref,
                            atol=2e-1, rtol=5e-2), float(
            jnp.max(jnp.abs(out_bf16.astype(jnp.float32) - ref)))

    k0, k1 = jax.random.split(jax.random.PRNGKey(0), 2)
    # Small-Cin CRNN ConvBlock (single im2col patch path), BN enabled.
    run_case(k0, 2, 4, 16, 16, 8, 3, 3, 1, True)
    # Wider-Cin layer (KH-split accumulation path), BN disabled.
    run_case(k1, 1, 64, 16, 16, 16, 3, 3, 1, False)
    print("KERNEL_OK")
</pallas_src>

<mosaic_0001>
module attributes {stable_mosaic.version = 11 : i64} {
  func.func @_conv_bn_relu_kernel(%arg0: i32, %arg1: i32, %arg2: memref<1x4x1x10x18xf32, #tpu.memory_space<vmem>>, %arg3: memref<1x8x36xf32, #tpu.memory_space<vmem>>, %arg4: memref<8x1xf32, #tpu.memory_space<vmem>>, %arg5: memref<8x1xf32, #tpu.memory_space<vmem>>, %arg6: memref<1x8x128xf32, #tpu.memory_space<vmem>>, %arg7: memref<8x128xf32, #tpu.memory_space<vmem>>) attributes {dimension_semantics = [#tpu.dimension_semantics<parallel>, #tpu.dimension_semantics<parallel>], iteration_bounds = array<i64: 2, 2>, scalar_prefetch = 0 : i64, scratch_operands = 1 : i64, tpu.core_type = #tpu.core_type<tc>, window_params = [{transform_indices = @transform_0, window_bounds = array<i64: 1, 4, 1, 10, 18>}, {pipeline_mode = #tpu.pipeline_mode<synchronous>, transform_indices = @transform_1, window_bounds = array<i64: 1, 8, 36>}, {pipeline_mode = #tpu.pipeline_mode<synchronous>, transform_indices = @transform_2, window_bounds = array<i64: 8, 1>}, {pipeline_mode = #tpu.pipeline_mode<synchronous>, transform_indices = @transform_3, window_bounds = array<i64: 8, 1>}, {transform_indices = @transform_4, window_bounds = array<i64: 1, 8, 128>}]} {
    %c0 = arith.constant 0 : index
    %c0_0 = arith.constant 0 : index
    %c0_1 = arith.constant 0 : index
    %c0_2 = arith.constant 0 : index
    %c0_3 = arith.constant 0 : index
    %0 = vector.load %arg2[%c0, %c0_0, %c0_1, %c0_2, %c0_3] : memref<1x4x1x10x18xf32, #tpu.memory_space<vmem>>, vector<1x4x1x10x18xf32>
    %1 = vector.shape_cast %0 : vector<1x4x1x10x18xf32> to vector<4x10x18xf32>
    %2 = vector.extract_strided_slice %1 {offsets = [0, 0, 0], sizes = [4, 8, 16], strides = [1, 1, 1]} : vector<4x10x18xf32> to vector<4x8x16xf32>
    %3 = vector.shape_cast %2 : vector<4x8x16xf32> to vector<4x128xf32>
    %4 = vector.extract_strided_slice %1 {offsets = [0, 0, 1], sizes = [4, 8, 16], strides = [1, 1, 1]} : vector<4x10x18xf32> to vector<4x8x16xf32>
    %5 = vector.shape_cast %4 : vector<4x8x16xf32> to vector<4x128xf32>
    %6 = vector.extract_strided_slice %1 {offsets = [0, 0, 2], sizes = [4, 8, 16], strides = [1, 1, 1]} : vector<4x10x18xf32> to vector<4x8x16xf32>
    %7 = vector.shape_cast %6 : vector<4x8x16xf32> to vector<4x128xf32>
    %8 = vector.extract_strided_slice %1 {offsets = [0, 1, 0], sizes = [4, 8, 16], strides = [1, 1, 1]} : vector<4x10x18xf32> to vector<4x8x16xf32>
    %9 = vector.shape_cast %8 : vector<4x8x16xf32> to vector<4x128xf32>
    %10 = vector.extract_strided_slice %1 {offsets = [0, 1, 1], sizes = [4, 8, 16], strides = [1, 1, 1]} : vector<4x10x18xf32> to vector<4x8x16xf32>
    %11 = vector.shape_cast %10 : vector<4x8x16xf32> to vector<4x128xf32>
    %12 = vector.extract_strided_slice %1 {offsets = [0, 1, 2], sizes = [4, 8, 16], strides = [1, 1, 1]} : vector<4x10x18xf32> to vector<4x8x16xf32>
    %13 = vector.shape_cast %12 : vector<4x8x16xf32> to vector<4x128xf32>
    %14 = vector.extract_strided_slice %1 {offsets = [0, 2, 0], sizes = [4, 8, 16], strides = [1, 1, 1]} : vector<4x10x18xf32> to vector<4x8x16xf32>
    %15 = vector.shape_cast %14 : vector<4x8x16xf32> to vector<4x128xf32>
    %16 = vector.extract_strided_slice %1 {offsets = [0, 2, 1], sizes = [4, 8, 16], strides = [1, 1, 1]} : vector<4x10x18xf32> to vector<4x8x16xf32>
    %17 = vector.shape_cast %16 : vector<4x8x16xf32> to vector<4x128xf32>
    %18 = vector.extract_strided_slice %1 {offsets = [0, 2, 2], sizes = [4, 8, 16], strides = [1, 1, 1]} : vector<4x10x18xf32> to vector<4x8x16xf32>
    %19 = vector.shape_cast %18 : vector<4x8x16xf32> to vector<4x128xf32>
    %20 = tpu.concatenate %3, %5, %7, %9, %11, %13, %15, %17, %19 in 0 : vector<4x128xf32>, vector<4x128xf32>, vector<4x128xf32>, vector<4x128xf32>, vector<4x128xf32>, vector<4x128xf32>, vector<4x128xf32>, vector<4x128xf32>, vector<4x128xf32> -> vector<36x128xf32>
    %c0_4 = arith.constant 0 : index
    %c0_5 = arith.constant 0 : index
    %c0_6 = arith.constant 0 : index
    %21 = vector.load %arg3[%c0_4, %c0_5, %c0_6] : memref<1x8x36xf32, #tpu.memory_space<vmem>>, vector<1x8x36xf32>
    %22 = vector.shape_cast %21 : vector<1x8x36xf32> to vector<8x36xf32>
    %cst = arith.constant dense<0.000000e+00> : vector<8x128xf32>
    %23 = tpu.matmul %22, %20, %cst {dimension_numbers = #tpu.dot_dimension_numbers<[1], [0], [0], [1], [0, 0, 1, 1], [], []>, precision = #tpu.contract_precision<fp32>} : vector<8x36xf32>, vector<36x128xf32>, vector<8x128xf32> -> vector<8x128xf32>
    %c0_7 = arith.constant 0 : index
    %c0_8 = arith.constant 0 : index
    %24 = vector.load %arg7[%c0_7, %c0_8] : memref<8x128xf32, #tpu.memory_space<vmem>>, vector<8x128xf32>
    tpu.vector_store %arg7[%c0_7, %c0_8], %23 {strides = array<i32>} : memref<8x128xf32, #tpu.memory_space<vmem>>, vector<8x128xf32>,
    %c0_9 = arith.constant 0 : index
    %c0_10 = arith.constant 0 : index
    %25 = vector.load %arg7[%c0_9, %c0_10] : memref<8x128xf32, #tpu.memory_space<vmem>>, vector<8x128xf32>
    %c0_11 = arith.constant 0 : index
    %c0_12 = arith.constant 0 : index
    %26 = vector.load %arg4[%c0_11, %c0_12] : memref<8x1xf32, #tpu.memory_space<vmem>>, vector<8x1xf32>
    %27 = vector.broadcast %26 : vector<8x1xf32> to vector<8x128xf32>
    %28 = arith.mulf %25, %27 : vector<8x128xf32>
    %c0_13 = arith.constant 0 : index
    %c0_14 = arith.constant 0 : index
    %29 = vector.load %arg5[%c0_13, %c0_14] : memref<8x1xf32, #tpu.memory_space<vmem>>, vector<8x1xf32>
    %30 = vector.broadcast %29 : vector<8x1xf32> to vector<8x128xf32>
    %31 = arith.addf %28, %30 : vector<8x128xf32>
    %cst_15 = arith.constant 0.000000e+00 : f32
    %32 = vector.broadcast %cst_15 : f32 to vector<8x128xf32>
    %33 = arith.maximumf %31, %32 : vector<8x128xf32>
    %c0_16 = arith.constant 0 : index
    %c0_17 = arith.constant 0 : index
    %c0_18 = arith.constant 0 : index
    %34 = vector.load %arg6[%c0_16, %c0_17, %c0_18] : memref<1x8x128xf32, #tpu.memory_space<vmem>>, vector<1x8x128xf32>
    %35 = vector.shape_cast %34 : vector<1x8x128xf32> to vector<8x128xf32>
    %36 = vector.shape_cast %33 : vector<8x128xf32> to vector<1x8x128xf32>
    tpu.vector_store %arg6[%c0_16, %c0_17, %c0_18], %36 {strides = array<i32>} : memref<1x8x128xf32, #tpu.memory_space<vmem>>, vector<1x8x128xf32>,
    return
  }
  func.func @transform_0(%arg0: i32, %arg1: i32) -> (i32, i32, i32, i32, i32) {
    %c0_i32 = arith.constant 0 : i32
    %c0_i32_0 = arith.constant 0 : i32
    %c0_i32_1 = arith.constant 0 : i32
    %c0_i32_2 = arith.constant 0 : i32
    return %arg0, %c0_i32, %arg1, %c0_i32_0, %c0_i32_1 : i32, i32, i32, i32, i32
  }
  func.func @transform_1(%arg0: i32, %arg1: i32) -> (i32, i32, i32) {
    %c0_i32 = arith.constant 0 : i32
    %c0_i32_0 = arith.constant 0 : i32
    %c0_i32_1 = arith.constant 0 : i32
    %c0_i32_2 = arith.constant 0 : i32
    return %c0_i32, %c0_i32_0, %c0_i32_1 : i32, i32, i32
  }
  func.func @transform_2(%arg0: i32, %arg1: i32) -> (i32, i32) {
    %c0_i32 = arith.constant 0 : i32
    %c0_i32_0 = arith.constant 0 : i32
    %c0_i32_1 = arith.constant 0 : i32
    return %c0_i32, %c0_i32_0 : i32, i32
  }
  func.func @transform_3(%arg0: i32, %arg1: i32) -> (i32, i32) {
    %c0_i32 = arith.constant 0 : i32
    %c0_i32_0 = arith.constant 0 : i32
    %c0_i32_1 = arith.constant 0 : i32
    return %c0_i32, %c0_i32_0 : i32, i32
  }
  func.func @transform_4(%arg0: i32, %arg1: i32) -> (i32, i32, i32) {
    %c0_i32 = arith.constant 0 : i32
    %c0_i32_0 = arith.constant 0 : i32
    return %arg0, %c0_i32, %arg1 : i32, i32, i32
  }
}

</mosaic_0001>

<llo_original>
// kernel: tpu_custom_call.1
$region0: #{tpu_custom_call.1}
  #allocation0 [shape = 'u32[]', space=smem, size = 0x4, offset = 0x4, fixed_abs, tag = 'smem constant byte address 0x4 - core index']
  #allocation1 [shape = 'u32[144,128]{1,0:T(1,128)}', space=vmem, size = 0x12000, scoped, tag = 'internal scratch']
  #allocation2 [shape = 'f32[8,128]{1,0:T(8,128)}', space=vmem, size = 0x1000, scoped, tag = 'scratch operand']
  %s0 = inlined_call_operand.vmem [shape: f32[2,4,2,10,18], index: 0, kind: input, shape index: {}]
  %s1 = inlined_call_operand.vmem [shape: f32[1,8,36], index: 1, kind: input, shape index: {}]
  %s2 = inlined_call_operand.vmem [shape: f32[8,1], index: 2, kind: input, shape index: {}]
  %s3 = inlined_call_operand.vmem [shape: f32[8,1], index: 3, kind: input, shape index: {}]
  %s4 = inlined_call_operand.hbm [shape: f32[2,8,256], index: 4, kind: output, shape index: {}]
  %s5 = sld [smem:[#allocation0]]
  $region87: #{tpu_custom_call.1} parent=0
    _
  %s7 = ssub.s32 1, %s5
  %s8 = scalar_select 0, %s7, %s5
  $region1: #{tpu_custom_call.1} parent=0
    #allocation3 [shape = 'u8[65536]{0}', space=vmem, size = 0x10000, scoped, tag = 'input window, operand 0']
    #allocation4 [shape = 'u8[8192]{0}', space=vmem, size = 0x2000, scoped, tag = 'output window, operand 0']
    #allocation5 [shape = 's32[2]{0}', space=sflag, size = 0x8, scoped, tag = 'scoped memory for tpu_custom_call.1']
    %9 = vsyncpa [#allocation5], 0
    %s10 = scalar_lea.sflag [#allocation5], 1
    %11 = vsyncpa %s10, 0
    loop: start=0, step=1, limit=6
    $region2: #{tpu_custom_call.1} parent=1 // loop_pre_header
      _
    $region3: #{tpu_custom_call.1} parent=1 // loop_header
      %s13 = sphi 0, %s17
      %p14 = scmp.ge.s32.totalorder %s13, 6
      %s20 = sphi 0, %s32
      %s21 = sphi 0, %s28
      %s22 = sphi 0, %s20
      %s23 = sphi 0, %s21
      %s24 = sphi 0, %s22
      %s25 = sphi 0, %s23
      %s37 = sphi 0, %s39
      %s40 = sphi 0, %s37
      %s41 = sphi 0, %s40
      %s57 = sphi 0, %s41
      %s61 = sphi 0, %s61
      %s63 = sphi 0, %s61
      %s64 = sphi 0, %s63
      %s78 = sphi 0, %s64
      %s82 = sphi 0, %s82
      %s84 = sphi 0, %s82
      %s85 = sphi 0, %s84
      %s99 = sphi 0, %s85
      %s103 = sphi 0, %s103
      %s105 = sphi 0, %s103
      %s106 = sphi 0, %s105
      %s120 = sphi 0, %s106
      %s128 = sphi 0, %s130
      %s131 = sphi 0, %s128
      %s132 = sphi 0, %s131
      %s148 = sphi 0, %s132
    $region4: #{tpu_custom_call.1} parent=1 // loop_header_branch
      %16 = sbr.rel (%p14) target = $region8
    $region5: #{tpu_custom_call.1} parent=1 // loop_body
      %s18 = ssub.s32 %s13, 1
      %s19 = ssub.s32 %s13, 2
      %s26 = sadd.s32 1, %s21
      %p27 = scmp.ge.s32.totalorder %s26, 2
      %s28 = scalar_select %p27, 0, %s26
      %s29 = sadd.s32 1, %s20
      %s30 = scalar_select %p27, %s29, %s20
      %p31 = scmp.ge.s32.totalorder %s30, 2
      %s32 = scalar_select %p31, 0, %s30
      %s33 = ssub.s32 %s20, %s32
      %s34 = ssub.s32 %s21, %s28
      %s35 = sor.u32 %s33, %s34
      %p36 = scmp.eq.s32.totalorder %s35, 0
      %s38 = sadd.s32 %s37, 1
      %s39 = scalar_select %p36, %s37, %s38
      %p42 = pneg %p36
      %p43 = scmp.eq.s32.totalorder %s13, 3
      %p44 = por %p42, %p43
      %p45 = scmp.ne.s32.totalorder %s37, %s40
      %p46 = scmp.eq.s32.totalorder %s13, 0
      %p47 = por %p45, %p46
      %p48 = scmp.ne.s32.totalorder %s37, %s40
      %p49 = scmp.eq.s32.totalorder %s18, 3
      %p50 = por %p48, %p49
      %p51 = scmp.ne.s32.totalorder %s40, %s41
      %p52 = scmp.eq.s32.totalorder %s18, 0
      %p53 = por %p51, %p52
      %p54 = scmp.ne.s32.totalorder %s40, %s41
      %p55 = scmp.eq.s32.totalorder %s19, 3
      %p56 = por %p54, %p55
      %p58 = scmp.ne.s32.totalorder %s41, %s57
      %p59 = scmp.eq.s32.totalorder %s19, 0
      %p60 = por %p58, %p59
      %s62 = sadd.s32 %s61, 1
      %p65 = scmp.eq.s32.totalorder %s13, 3
      %p66 = scmp.ne.s32.totalorder %s61, %s63
      %p67 = scmp.eq.s32.totalorder %s13, 0
      %p68 = por %p66, %p67
      %p69 = scmp.ne.s32.totalorder %s61, %s63
      %p70 = scmp.eq.s32.totalorder %s18, 3
      %p71 = por %p69, %p70
      %p72 = scmp.ne.s32.totalorder %s63, %s64
      %p73 = scmp.eq.s32.totalorder %s18, 0
      %p74 = por %p72, %p73
      %p75 = scmp.ne.s32.totalorder %s63, %s64
      %p76 = scmp.eq.s32.totalorder %s19, 3
      %p77 = por %p75, %p76
      %p79 = scmp.ne.s32.totalorder %s64, %s78
      %p80 = scmp.eq.s32.totalorder %s19, 0
      %p81 = por %p79, %p80
      %s83 = sadd.s32 %s82, 1
      %p86 = scmp.eq.s32.totalorder %s13, 3
      %p87 = scmp.ne.s32.totalorder %s82, %s84
      %p88 = scmp.eq.s32.totalorder %s13, 0
      %p89 = por %p87, %p88
      %p90 = scmp.ne.s32.totalorder %s82, %s84
      %p91 = scmp.eq.s32.totalorder %s18, 3
      %p92 = por %p90, %p91
      %p93 = scmp.ne.s32.totalorder %s84, %s85
      %p94 = scmp.eq.s32.totalorder %s18, 0
      %p95 = por %p93, %p94
      %p96 = scmp.ne.s32.totalorder %s84, %s85
      %p97 = scmp.eq.s32.totalorder %s19, 3
      %p98 = por %p96, %p97
      %p100 = scmp.ne.s32.totalorder %s85, %s99
      %p101 = scmp.eq.s32.totalorder %s19, 0
      %p102 = por %p100, %p101
      %s104 = sadd.s32 %s103, 1
      %p107 = scmp.eq.s32.totalorder %s13, 3
      %p108 = scmp.ne.s32.totalorder %s103, %s105
      %p109 = scmp.eq.s32.totalorder %s13, 0
      %p110 = por %p108, %p109
      %p111 = scmp.ne.s32.totalorder %s103, %s105
      %p112 = scmp.eq.s32.totalorder %s18, 3
      %p113 = por %p111, %p112
      %p114 = scmp.ne.s32.totalorder %s105, %s106
      %p115 = scmp.eq.s32.totalorder %s18, 0
      %p116 = por %p114, %p115
      %p117 = scmp.ne.s32.totalorder %s105, %s106
      %p118 = scmp.eq.s32.totalorder %s19, 3
      %p119 = por %p117, %p118
      %p121 = scmp.ne.s32.totalorder %s106, %s120
      %p122 = scmp.eq.s32.totalorder %s19, 0
      %p123 = por %p121, %p122
      %s124 = ssub.s32 %s20, %s32
      %s125 = ssub.s32 %s21, %s28
      %s126 = sor.u32 %s124, %s125
      %p127 = scmp.eq.s32.totalorder %s126, 0
      %s129 = sadd.s32 %s128, 1
      %s130 = scalar_select %p127, %s128, %s129
      %p133 = pneg %p127
      %p134 = scmp.eq.s32.totalorder %s13, 3
      %p135 = por %p133, %p134
      %p136 = scmp.ne.s32.totalorder %s128, %s131
      %p137 = scmp.eq.s32.totalorder %s13, 0
      %p138 = por %p136, %p137
      %p139 = scmp.ne.s32.totalorder %s128, %s131
      %p140 = scmp.eq.s32.totalorder %s18, 3
      %p141 = por %p139, %p140
      %p142 = scmp.ne.s32.totalorder %s131, %s132
      %p143 = scmp.eq.s32.totalorder %s18, 0
      %p144 = por %p142, %p143
      %p145 = scmp.ne.s32.totalorder %s131, %s132
      %p146 = scmp.eq.s32.totalorder %s19, 3
      %p147 = por %p145, %p146
      %p149 = scmp.ne.s32.totalorder %s132, %s148
      %p150 = scmp.eq.s32.totalorder %s19, 0
      %p151 = por %p149, %p150
      %p152 = scmp.le.s32.totalorder 1, %s13
      %p153 = scmp.lt.s32.totalorder %s13, 5
      %p154 = pnand %p152, %p153
      %p155 = pneg %p154
      // Predicated region
      $region9: #{tpu_custom_call.1} parent=5 // pred_check
        _
      $region10: #{tpu_custom_call.1} parent=5 // pred_check_branch
        %157 = sbr.rel (%p154) target = $region12
      $region11: #{tpu_custom_call.1} parent=5 // pred_region
        %s158 = ssub.s32 %s13, 1
        // Predicated region
        $region13: #{tpu_custom_call.1} parent=11 // pred_check
          %p159 = pneg %p74
        $region14: #{tpu_custom_call.1} parent=11 // pred_check_branch
          %161 = sbr.rel (%p159) target = $region16
        $region15: #{tpu_custom_call.1} parent=11 // pred_region
          _
        $region16: #{tpu_custom_call.1} parent=11 // pred_fallthru
          _
        // Predicated region
        $region17: #{tpu_custom_call.1} parent=11 // pred_check
          %p162 = pneg %p95
        $region18: #{tpu_custom_call.1} parent=11 // pred_check_branch
          %164 = sbr.rel (%p162) target = $region20
        $region19: #{tpu_custom_call.1} parent=11 // pred_region
          _
        $region20: #{tpu_custom_call.1} parent=11 // pred_fallthru
          _
        // Predicated region
        $region21: #{tpu_custom_call.1} parent=11 // pred_check
          %p165 = pneg %p116
        $region22: #{tpu_custom_call.1} parent=11 // pred_check_branch
          %167 = sbr.rel (%p165) target = $region24
        $region23: #{tpu_custom_call.1} parent=11 // pred_region
          _
        $region24: #{tpu_custom_call.1} parent=11 // pred_fallthru
          _
      $region12: #{tpu_custom_call.1} parent=5 // pred_fallthru
        _
      %p168 = scmp.lt.s32.totalorder %s13, 4
      // Predicated region
      $region25: #{tpu_custom_call.1} parent=5 // pred_check
        %p169 = pneg %p168
      $region26: #{tpu_custom_call.1} parent=5 // pred_check_branch
        %171 = sbr.rel (%p169) target = $region28
      $region27: #{tpu_custom_call.1} parent=5 // pred_region
        // Predicated region
        $region29: #{tpu_custom_call.1} parent=27 // pred_check
          %p172 = pneg %p47
        $region30: #{tpu_custom_call.1} parent=27 // pred_check_branch
          %174 = sbr.rel (%p172) target = $region32
        $region31: #{tpu_custom_call.1} parent=27 // pred_region
          %s175 = sand.u32 %s37, 1
          %s176 = sand.u32 %s37, 1
          %s177 = smul.addr %s176, 64
          %s178 = scalar_lea.vmem [#allocation3], %s177
          %s179 = smul.addr %s21, 2
          %s180 = smul.addr %s20, 16
          %s181 = sadd.s32 %s179, %s180
          %s182 = smul.addr %s181, 8
          %s183 = scalar_lea.vmem %s0, %s182
          // Predicated region
          $region33: #{tpu_custom_call.1} parent=31 // pred_check
            _
          $region34: #{tpu_custom_call.1} parent=31 // pred_check_branch
            %185 = sbr.rel (0) target = $region36
          $region35: #{tpu_custom_call.1} parent=31 // pred_region
            // Predicated region
            $region37: #{tpu_custom_call.1} parent=35 // pred_check
              _
            $region38: #{tpu_custom_call.1} parent=35 // pred_check_branch
              %187 = sbr.rel (0) target = $region40
            $region39: #{tpu_custom_call.1} parent=35 // pred_region
              // Predicated region
              $region52: #{tpu_custom_call.1} parent=39 // pred_check
                _
              $region53: #{tpu_custom_call.1} parent=39 // pred_check_branch
                %216 = sbr.rel (0) target = $region55
              $region54: #{tpu_custom_call.1} parent=39 // pred_region
                loop: start=0, step=1, limit=1
                $region56: #{tpu_custom_call.1} parent=54 // loop_pre_header
                  _
                $region57: #{tpu_custom_call.1} parent=54 // loop_header
                  %s218 = sphi 0, %s222
                  %p219 = scmp.ge.s32.totalorder %s218, 1
                  %s223 = sphi %s183, %s183
                  %s224 = sphi %s178, %s178
                $region58: #{tpu_custom_call.1} parent=54 // loop_header_branch
                  %221 = sbr.rel (%p219) target = $region62
                $region59: #{tpu_custom_call.1} parent=54 // loop_body
                  %v225 = vld [vmem:[%s223] sm:$0xff]
                  %226 = vst [vmem:[%s224] sm:$0xff] %v225
                  %v227 = vld [vmem:[%s223 + $0x8] sm:$0xff]
                  %228 = vst [vmem:[%s224 + $0x8] sm:$0xff] %v227
                  %v229 = vld [vmem:[%s223 + $0x20] sm:$0xff]
                  %230 = vst [vmem:[%s224 + $0x10] sm:$0xff] %v229
                  %v231 = vld [vmem:[%s223 + $0x28] sm:$0xff]
                  %232 = vst [vmem:[%s224 + $0x18] sm:$0xff] %v231
                  %v233 = vld [vmem:[%s223 + $0x40] sm:$0xff]
                  %234 = vst [vmem:[%s224 + $0x20] sm:$0xff] %v233
                  %v235 = vld [vmem:[%s223 + $0x48] sm:$0xff]
                  %236 = vst [vmem:[%s224 + $0x28] sm:$0xff] %v235
                  %v237 = vld [vmem:[%s223 + $0x60] sm:$0xff]
                  %238 = vst [vmem:[%s224 + $0x30] sm:$0xff] %v237
                  %v239 = vld [vmem:[%s223 + $0x68] sm:$0xff]
                  %240 = vst [vmem:[%s224 + $0x38] sm:$0xff] %v239
                $region60: #{tpu_custom_call.1} parent=54 // loop_footer
                  %s222 = sadd.s32 1, %s218
                $region61: #{tpu_custom_call.1} parent=54 // loop_footer_branch
                  %217 = sbr.rel target = $region57
                $region62: #{tpu_custom_call.1} parent=54 // loop_exit
                  _
              $region55: #{tpu_custom_call.1} parent=39 // pred_fallthru
                _
              // Predicated region
              $region63: #{tpu_custom_call.1} parent=39 // pred_check
                _
              $region64: #{tpu_custom_call.1} parent=39 // pred_check_branch
                %242 = sbr.rel target = $region66
              $region65: #{tpu_custom_call.1} parent=39 // pred_region
                _
              $region66: #{tpu_custom_call.1} parent=39 // pred_fallthru
                _
            $region40: #{tpu_custom_call.1} parent=35 // pred_fallthru
              _
            // Predicated region
            $region41: #{tpu_custom_call.1} parent=35 // pred_check
              _
            $region42: #{tpu_custom_call.1} parent=35 // pred_check_branch
              %189 = sbr.rel target = $region44
            $region43: #{tpu_custom_call.1} parent=35 // pred_region
              loop: start=0, step=1, limit=1
              $region45: #{tpu_custom_call.1} parent=43 // loop_pre_header
                _
              $region46: #{tpu_custom_call.1} parent=43 // loop_header
                %s192 = sphi 0, %s196
                %p193 = scmp.ge.s32.totalorder %s192, 1
                %s197 = sphi %s183, %s183
                %s198 = sphi %s178, %s178
              $region47: #{tpu_custom_call.1} parent=43 // loop_header_branch
                %195 = sbr.rel (%p193) target = $region51
              $region48: #{tpu_custom_call.1} parent=43 // loop_body
                %v199 = vld [vmem:[%s197] sm:$0xff]
                %200 = vst [vmem:[%s198] sm:$0xff] %v199
                %v201 = vld [vmem:[%s197 + $0x8] sm:$0xff]
                %202 = vst [vmem:[%s198 + $0x8] sm:$0xff] %v201
                %v203 = vld [vmem:[%s197 + $0x20] sm:$0xff]
                %204 = vst [vmem:[%s198 + $0x10] sm:$0xff] %v203
                %v205 = vld [vmem:[%s197 + $0x28] sm:$0xff]
                %206 = vst [vmem:[%s198 + $0x18] sm:$0xff] %v205
                %v207 = vld [vmem:[%s197 + $0x40] sm:$0xff]
                %208 = vst [vmem:[%s198 + $0x20] sm:$0xff] %v207
                %v209 = vld [vmem:[%s197 + $0x48] sm:$0xff]
                %210 = vst [vmem:[%s198 + $0x28] sm:$0xff] %v209
                %v211 = vld [vmem:[%s197 + $0x60] sm:$0xff]
                %212 = vst [vmem:[%s198 + $0x30] sm:$0xff] %v211
                %v213 = vld [vmem:[%s197 + $0x68] sm:$0xff]
                %214 = vst [vmem:[%s198 + $0x38] sm:$0xff] %v213
              $region49: #{tpu_custom_call.1} parent=43 // loop_footer
                %s196 = sadd.s32 1, %s192
              $region50: #{tpu_custom_call.1} parent=43 // loop_footer_branch
                %191 = sbr.rel target = $region46
              $region51: #{tpu_custom_call.1} parent=43 // loop_exit
                _
            $region44: #{tpu_custom_call.1} parent=35 // pred_fallthru
              _
          $region36: #{tpu_custom_call.1} parent=31 // pred_fallthru
            _
          %243 = vnop
        $region32: #{tpu_custom_call.1} parent=27 // pred_fallthru
          _
      $region28: #{tpu_custom_call.1} parent=5 // pred_fallthru
        _
      %p244 = scmp.le.s32.totalorder 1, %s13
      %p245 = scmp.lt.s32.totalorder %s13, 5
      %p246 = pnand %p244, %p245
      %p247 = pneg %p246
      // Predicated region
      $region67: #{tpu_custom_call.1} parent=5 // pred_check
        _
      $region68: #{tpu_custom_call.1} parent=5 // pred_check_branch
        %249 = sbr.rel (%p246) target = $region70
      $region69: #{tpu_custom_call.1} parent=5 // pred_region
        %s250 = ssub.s32 %s13, 1
        %s251 = sand.u32 %s40, 1
        %s252 = sand.u32 %s40, 1
        %s253 = smul.addr %s252, 64
        %s254 = scalar_lea.vmem [#allocation3], %s253
        // Predicated region
        $region71: #{tpu_custom_call.1} parent=69 // pred_check
          %p255 = pneg %p53
        $region72: #{tpu_custom_call.1} parent=69 // pred_check_branch
          %257 = sbr.rel (%p255) target = $region74
        $region73: #{tpu_custom_call.1} parent=69 // pred_region
          _
        $region74: #{tpu_custom_call.1} parent=69 // pred_fallthru
          _
        %s258 = sand.u32 %s40, 1
        %s259 = sand.u32 %s40, 1
        %s260 = smul.addr %s259, 64
        %s261 = scalar_lea.vmem [#allocation3], %s260
        %p262 = pneg %p53
        %p263 = pneg %p50
        %p264 = pneg %p74
        %p265 = pneg %p71
        %p266 = pneg %p95
        %p267 = pneg %p92
        %p268 = pneg %p116
        %p269 = pneg %p113
        %p270 = pneg %p144
        %p271 = pneg %p141
        %s272 = sand.u32 %s131, 1
        %s273 = scalar_lea.sflag [#allocation5], %s272
        %s274 = sand.u32 %s131, 1
        %s275 = smul.addr %s274, 8
        %s276 = scalar_lea.vmem [#allocation4], %s275
        %v277 = vld [vmem:[%s254] sm:$0xff]
        %v278 = vld [vmem:[%s254 + $0x8] sm:$0x3]
        %v279 = vld [vmem:[%s254 + $0x10] sm:$0xff]
        %v280 = vld [vmem:[%s254 + $0x18] sm:$0x3]
        %v281 = vld [vmem:[%s254 + $0x20] sm:$0xff]
        %v282 = vld [vmem:[%s254 + $0x28] sm:$0x3]
        %v283 = vld [vmem:[%s254 + $0x30] sm:$0xff]
        %v284 = vld [vmem:[%s254 + $0x38] sm:$0x3]
        %v285 = vcombine.low %v277, %v281
        %v286 = vcombine.high %v277, %v281
        %v288 = vunpack.c.l.s4 1983009808
        %v289 = vunpack.c.0.s8 %v288
        %v290 = vlaneseq
        %v291 = vshrl.u32 %v290, 7
        %v292 = vsub.s32 %v289, %v291
        %v293 = vrot.slane %v285, %v292
        %v295 = vunpack.c.l.s4 1983009808
        %v296 = vunpack.c.0.s8 %v295
        %v297 = vlaneseq
        %v298 = vshrl.u32 %v297, 7
        %v299 = vsub.s32 %v296, %v298
        %v300 = vrot.slane %v286, %v299
        %v301 = vcombine.low %v279, %v283
        %v302 = vcombine.high %v279, %v283
        %v304 = vunpack.c.l.s4 1983009808
        %v305 = vunpack.c.0.s8 %v304
        %v306 = vlaneseq
        %v307 = vshrl.u32 %v306, 7
        %v308 = vsub.s32 %v305, %v307
        %v309 = vrot.slane %v301, %v308
        %v311 = vunpack.c.l.s4 1983009808
        %v312 = vunpack.c.0.s8 %v311
        %v313 = vlaneseq
        %v314 = vshrl.u32 %v313, 7
        %v315 = vsub.s32 %v312, %v314
        %v316 = vrot.slane %v302, %v315
        %v317 = vcombine.low %v293, %v309
        %v318 = vcombine.high %v293, %v309
        %v320 = vunpack.c.l.s4 1934713408
        %v321 = vunpack.c.0.s8 %v320
        %v322 = vlaneseq
        %v323 = vshrl.u32 %v322, 7
        %v324 = vsub.s32 %v321, %v323
        %v325 = vrot.slane %v317, %v324
        %v327 = vunpack.c.l.s4 1934713408
        %v328 = vunpack.c.0.s8 %v327
        %v329 = vlaneseq
        %v330 = vshrl.u32 %v329, 7
        %v331 = vsub.s32 %v328, %v330
        %v332 = vrot.slane %v318, %v331
        %v333 = vcombine.low %v300, %v316
        %v334 = vcombine.high %v300, %v316
        %v336 = vunpack.c.l.s4 1934713408
        %v337 = vunpack.c.0.s8 %v336
        %v338 = vlaneseq
        %v339 = vshrl.u32 %v338, 7
        %v340 = vsub.s32 %v337, %v339
        %v341 = vrot.slane %v333, %v340
        %v343 = vunpack.c.l.s4 1934713408
        %v344 = vunpack.c.0.s8 %v343
        %v345 = vlaneseq
        %v346 = vshrl.u32 %v345, 7
        %v347 = vsub.s32 %v344, %v346
        %v348 = vrot.slane %v334, %v347
        %v349 = vcombine.high %v325, 0.0
        %v350 = vcombine.high %v332, 0.0
        %v351 = vcombine.high %v341, 0.0
        %v352 = vcombine.high %v348, 0.0
        %354 = vrot.lane.b32.xlu0 %v349, 16
        %v355 = vpop.permute.xlu0 %354
        %358 = vrot.lane.b32.xlu0 %v332, 32
        %v359 = vpop.permute.xlu0 %358
        %362 = vrot.lane.b32.xlu0 %v350, 48
        %v363 = vpop.permute.xlu0 %362
        %366 = vrot.lane.b32.xlu0 %v341, 64
        %v367 = vpop.permute.xlu0 %366
        %370 = vrot.lane.b32.xlu0 %v351, 80
        %v371 = vpop.permute.xlu0 %370
        %374 = vrot.lane.b32.xlu0 %v348, 96
        %v375 = vpop.permute.xlu0 %374
        %378 = vrot.lane.b32.xlu0 %v352, 112
        %v379 = vpop.permute.xlu0 %378
        %vm381 = vcmask 130048
        %v382 = vsel %vm381, %v325, %v355
        %vm383 = vcmask 261120
        %v384 = vsel %vm383, %v382, %v359
        %vm385 = vcmask 392192
        %v386 = vsel %vm385, %v384, %v363
        %vm387 = vcmask 523264
        %v388 = vsel %vm387, %v386, %v367
        %vm389 = vcmask 654336
        %v390 = vsel %vm389, %v388, %v371
        %vm391 = vcmask 785408
        %v392 = vsel %vm391, %v390, %v375
        %vm393 = vcmask 916480
        %v394 = vsel %vm393, %v392, %v379
        %399 = vrot.lane.b32.xlu0 %v277, 127
        %v400 = vpop.permute.xlu0 %399
        %401 = vrot.lane.b32.xlu0 %v279, 127
        %v402 = vpop.permute.xlu0 %401
        %403 = vrot.lane.b32.xlu0 %v281, 127
        %v404 = vpop.permute.xlu0 %403
        %405 = vrot.lane.b32.xlu0 %v283, 127
        %v406 = vpop.permute.xlu0 %405
        %v411 = vcombine.low %v400, %v404
        %v412 = vcombine.high %v400, %v404
        %v414 = vunpack.c.l.s4 1983009808
        %v415 = vunpack.c.0.s8 %v414
        %v416 = vlaneseq
        %v417 = vshrl.u32 %v416, 7
        %v418 = vsub.s32 %v415, %v417
        %v419 = vrot.slane %v411, %v418
        %v421 = vunpack.c.l.s4 1983009808
        %v422 = vunpack.c.0.s8 %v421
        %v423 = vlaneseq
        %v424 = vshrl.u32 %v423, 7
        %v425 = vsub.s32 %v422, %v424
        %v426 = vrot.slane %v412, %v425
        %v427 = vcombine.low %v402, %v406
        %v428 = vcombine.high %v402, %v406
        %v430 = vunpack.c.l.s4 1983009808
        %v431 = vunpack.c.0.s8 %v430
        %v432 = vlaneseq
        %v433 = vshrl.u32 %v432, 7
        %v434 = vsub.s32 %v431, %v433
        %v435 = vrot.slane %v427, %v434
        %v437 = vunpack.c.l.s4 1983009808
        %v438 = vunpack.c.0.s8 %v437
        %v439 = vlaneseq
        %v440 = vshrl.u32 %v439, 7
        %v441 = vsub.s32 %v438, %v440
        %v442 = vrot.slane %v428, %v441
        %v443 = vcombine.low %v419, %v435
        %v444 = vcombine.high %v419, %v435
        %v446 = vunpack.c.l.s4 1934713408
        %v447 = vunpack.c.0.s8 %v446
        %v448 = vlaneseq
        %v449 = vshrl.u32 %v448, 7
        %v450 = vsub.s32 %v447, %v449
        %v451 = vrot.slane %v443, %v450
        %v453 = vunpack.c.l.s4 1934713408
        %v454 = vunpack.c.0.s8 %v453
        %v455 = vlaneseq
        %v456 = vshrl.u32 %v455, 7
        %v457 = vsub.s32 %v454, %v456
        %v458 = vrot.slane %v444, %v457
        %v459 = vcombine.low %v426, %v442
        %v460 = vcombine.high %v426, %v442
        %v462 = vunpack.c.l.s4 1934713408
        %v463 = vunpack.c.0.s8 %v462
        %v464 = vlaneseq
        %v465 = vshrl.u32 %v464, 7
        %v466 = vsub.s32 %v463, %v465
        %v467 = vrot.slane %v459, %v466
        %v469 = vunpack.c.l.s4 1934713408
        %v470 = vunpack.c.0.s8 %v469
        %v471 = vlaneseq
        %v472 = vshrl.u32 %v471, 7
        %v473 = vsub.s32 %v470, %v472
        %v474 = vrot.slane %v460, %v473
        %v475 = vcombine.high %v451, 0.0
        %v476 = vcombine.high %v458, 0.0
        %v477 = vcombine.high %v467, 0.0
        %v478 = vcombine.high %v474, 0.0
        %480 = vrot.lane.b32.xlu0 %v475, 16
        %v481 = vpop.permute.xlu0 %480
        %484 = vrot.lane.b32.xlu0 %v458, 32
        %v485 = vpop.permute.xlu0 %484
        %488 = vrot.lane.b32.xlu0 %v476, 48
        %v489 = vpop.permute.xlu0 %488
        %492 = vrot.lane.b32.xlu0 %v467, 64
        %v493 = vpop.permute.xlu0 %492
        %496 = vrot.lane.b32.xlu0 %v477, 80
        %v497 = vpop.permute.xlu0 %496
        %500 = vrot.lane.b32.xlu0 %v474, 96
        %v501 = vpop.permute.xlu0 %500
        %504 = vrot.lane.b32.xlu0 %v478, 112
        %v505 = vpop.permute.xlu0 %504
        %v507 = vsel %vm381, %v451, %v481
        %v508 = vsel %vm383, %v507, %v485
        %v509 = vsel %vm385, %v508, %v489
        %v510 = vsel %vm387, %v509, %v493
        %v511 = vsel %vm389, %v510, %v497
        %v512 = vsel %vm391, %v511, %v501
        %v513 = vsel %vm393, %v512, %v505
        %514 = vrot.lane.b32.xlu0 %v277, 126
        %v515 = vpop.permute.xlu0 %514
        %516 = vrot.lane.b32.xlu0 %v279, 126
        %v517 = vpop.permute.xlu0 %516
        %518 = vrot.lane.b32.xlu0 %v281, 126
        %v519 = vpop.permute.xlu0 %518
        %520 = vrot.lane.b32.xlu0 %v283, 126
        %v521 = vpop.permute.xlu0 %520
        %v526 = vcombine.low %v515, %v519
        %v527 = vcombine.high %v515, %v519
        %v529 = vunpack.c.l.s4 1983009808
        %v530 = vunpack.c.0.s8 %v529
        %v531 = vlaneseq
        %v532 = vshrl.u32 %v531, 7
        %v533 = vsub.s32 %v530, %v532
        %v534 = vrot.slane %v526, %v533
        %v536 = vunpack.c.l.s4 1983009808
        %v537 = vunpack.c.0.s8 %v536
        %v538 = vlaneseq
        %v539 = vshrl.u32 %v538, 7
        %v540 = vsub.s32 %v537, %v539
        %v541 = vrot.slane %v527, %v540
        %v542 = vcombine.low %v517, %v521
        %v543 = vcombine.high %v517, %v521
        %v545 = vunpack.c.l.s4 1983009808
        %v546 = vunpack.c.0.s8 %v545
        %v547 = vlaneseq
        %v548 = vshrl.u32 %v547, 7
        %v549 = vsub.s32 %v546, %v548
        %v550 = vrot.slane %v542, %v549
        %v552 = vunpack.c.l.s4 1983009808
        %v553 = vunpack.c.0.s8 %v552
        %v554 = vlaneseq
        %v555 = vshrl.u32 %v554, 7
        %v556 = vsub.s32 %v553, %v555
        %v557 = vrot.slane %v543, %v556
        %v558 = vcombine.low %v534, %v550
        %v559 = vcombine.high %v534, %v550
        %v561 = vunpack.c.l.s4 1934713408
        %v562 = vunpack.c.0.s8 %v561
        %v563 = vlaneseq
        %v564 = vshrl.u32 %v563, 7
        %v565 = vsub.s32 %v562, %v564
        %v566 = vrot.slane %v558, %v565
        %v568 = vunpack.c.l.s4 1934713408
        %v569 = vunpack.c.0.s8 %v568
        %v570 = vlaneseq
        %v571 = vshrl.u32 %v570, 7
        %v572 = vsub.s32 %v569, %v571
        %v573 = vrot.slane %v559, %v572
        %v574 = vcombine.low %v541, %v557
        %v575 = vcombine.high %v541, %v557
        %v577 = vunpack.c.l.s4 1934713408
        %v578 = vunpack.c.0.s8 %v577
        %v579 = vlaneseq
        %v580 = vshrl.u32 %v579, 7
        %v581 = vsub.s32 %v578, %v580
        %v582 = vrot.slane %v574, %v581
        %v584 = vunpack.c.l.s4 1934713408
        %v585 = vunpack.c.0.s8 %v584
        %v586 = vlaneseq
        %v587 = vshrl.u32 %v586, 7
        %v588 = vsub.s32 %v585, %v587
        %v589 = vrot.slane %v575, %v588
        %v590 = vcombine.high %v566, 0.0
        %v591 = vcombine.high %v573, 0.0
        %v592 = vcombine.high %v582, 0.0
        %v593 = vcombine.high %v589, 0.0
        %595 = vrot.lane.b32.xlu0 %v590, 16
        %v596 = vpop.permute.xlu0 %595
        %599 = vrot.lane.b32.xlu0 %v573, 32
        %v600 = vpop.permute.xlu0 %599
        %603 = vrot.lane.b32.xlu0 %v591, 48
        %v604 = vpop.permute.xlu0 %603
        %607 = vrot.lane.b32.xlu0 %v582, 64
        %v608 = vpop.permute.xlu0 %607
        %611 = vrot.lane.b32.xlu0 %v592, 80
        %v612 = vpop.permute.xlu0 %611
        %615 = vrot.lane.b32.xlu0 %v589, 96
        %v616 = vpop.permute.xlu0 %615
        %619 = vrot.lane.b32.xlu0 %v593, 112
        %v620 = vpop.permute.xlu0 %619
        %v622 = vsel %vm381, %v566, %v596
        %v623 = vsel %vm383, %v622, %v600
        %v624 = vsel %vm385, %v623, %v604
        %v625 = vsel %vm387, %v624, %v608
        %v626 = vsel %vm389, %v625, %v612
        %v627 = vsel %vm391, %v626, %v616
        %v628 = vsel %vm393, %v627, %v620
        %vm633 = vcmask 1046528
        %v634 = vrot.slane %v277, 1
        %v635 = vrot.slane %v278, 1
        %v636 = vsel %vm633, %v634, %v635
        %v637 = vrot.slane %v279, 1
        %v638 = vrot.slane %v280, 1
        %v639 = vsel %vm633, %v637, %v638
        %v640 = vrot.slane %v281, 1
        %v641 = vrot.slane %v282, 1
        %v642 = vsel %vm633, %v640, %v641
        %v643 = vrot.slane %v283, 1
        %v644 = vrot.slane %v284, 1
        %v645 = vsel %vm633, %v643, %v644
        %v650 = vcombine.low %v636, %v642
        %v651 = vcombine.high %v636, %v642
        %v653 = vunpack.c.l.s4 1983009808
        %v654 = vunpack.c.0.s8 %v653
        %v655 = vlaneseq
        %v656 = vshrl.u32 %v655, 7
        %v657 = vsub.s32 %v654, %v656
        %v658 = vrot.slane %v650, %v657
        %v660 = vunpack.c.l.s4 1983009808
        %v661 = vunpack.c.0.s8 %v660
        %v662 = vlaneseq
        %v663 = vshrl.u32 %v662, 7
        %v664 = vsub.s32 %v661, %v663
        %v665 = vrot.slane %v651, %v664
        %v666 = vcombine.low %v639, %v645
        %v667 = vcombine.high %v639, %v645
        %v669 = vunpack.c.l.s4 1983009808
        %v670 = vunpack.c.0.s8 %v669
        %v671 = vlaneseq
        %v672 = vshrl.u32 %v671, 7
        %v673 = vsub.s32 %v670, %v672
        %v674 = vrot.slane %v666, %v673
        %v676 = vunpack.c.l.s4 1983009808
        %v677 = vunpack.c.0.s8 %v676
        %v678 = vlaneseq
        %v679 = vshrl.u32 %v678, 7
        %v680 = vsub.s32 %v677, %v679
        %v681 = vrot.slane %v667, %v680
        %v682 = vcombine.low %v658, %v674
        %v683 = vcombine.high %v658, %v674
        %v685 = vunpack.c.l.s4 1934713408
        %v686 = vunpack.c.0.s8 %v685
        %v687 = vlaneseq
        %v688 = vshrl.u32 %v687, 7
        %v689 = vsub.s32 %v686, %v688
        %v690 = vrot.slane %v682, %v689
        %v692 = vunpack.c.l.s4 1934713408
        %v693 = vunpack.c.0.s8 %v692
        %v694 = vlaneseq
        %v695 = vshrl.u32 %v694, 7
        %v696 = vsub.s32 %v693, %v695
        %v697 = vrot.slane %v683, %v696
        %v698 = vcombine.low %v665, %v681
        %v699 = vcombine.high %v665, %v681
        %v701 = vunpack.c.l.s4 1934713408
        %v702 = vunpack.c.0.s8 %v701
        %v703 = vlaneseq
        %v704 = vshrl.u32 %v703, 7
        %v705 = vsub.s32 %v702, %v704
        %v706 = vrot.slane %v698, %v705
        %v708 = vunpack.c.l.s4 1934713408
        %v709 = vunpack.c.0.s8 %v708
        %v710 = vlaneseq
        %v711 = vshrl.u32 %v710, 7
        %v712 = vsub.s32 %v709, %v711
        %v713 = vrot.slane %v699, %v712
        %v714 = vcombine.high %v690, 0.0
        %v715 = vcombine.high %v697, 0.0
        %v716 = vcombine.high %v706, 0.0
        %v717 = vcombine.high %v713, 0.0
        %719 = vrot.lane.b32.xlu0 %v714, 16
        %v720 = vpop.permute.xlu0 %719
        %723 = vrot.lane.b32.xlu0 %v697, 32
        %v724 = vpop.permute.xlu0 %723
        %727 = vrot.lane.b32.xlu0 %v715, 48
        %v728 = vpop.permute.xlu0 %727
        %731 = vrot.lane.b32.xlu0 %v706, 64
        %v732 = vpop.permute.xlu0 %731
        %735 = vrot.lane.b32.xlu0 %v716, 80
        %v736 = vpop.permute.xlu0 %735
        %739 = vrot.lane.b32.xlu0 %v713, 96
        %v740 = vpop.permute.xlu0 %739
        %743 = vrot.lane.b32.xlu0 %v717, 112
        %v744 = vpop.permute.xlu0 %743
        %v746 = vsel %vm381, %v690, %v720
        %v747 = vsel %vm383, %v746, %v724
        %v748 = vsel %vm385, %v747, %v728
        %v749 = vsel %vm387, %v748, %v732
        %v750 = vsel %vm389, %v749, %v736
        %v751 = vsel %vm391, %v750, %v740
        %v752 = vsel %vm393, %v751, %v744
        %753 = vrot.lane.b32.xlu0 %v636, 127
        %v754 = vpop.permute.xlu0 %753
        %755 = vrot.lane.b32.xlu0 %v639, 127
        %v756 = vpop.permute.xlu0 %755
        %757 = vrot.lane.b32.xlu0 %v642, 127
        %v758 = vpop.permute.xlu0 %757
        %759 = vrot.lane.b32.xlu0 %v645, 127
        %v760 = vpop.permute.xlu0 %759
        %v765 = vcombine.low %v754, %v758
        %v766 = vcombine.high %v754, %v758
        %v768 = vunpack.c.l.s4 1983009808
        %v769 = vunpack.c.0.s8 %v768
        %v770 = vlaneseq
        %v771 = vshrl.u32 %v770, 7
        %v772 = vsub.s32 %v769, %v771
        %v773 = vrot.slane %v765, %v772
        %v775 = vunpack.c.l.s4 1983009808
        %v776 = vunpack.c.0.s8 %v775
        %v777 = vlaneseq
        %v778 = vshrl.u32 %v777, 7
        %v779 = vsub.s32 %v776, %v778
        %v780 = vrot.slane %v766, %v779
        %v781 = vcombine.low %v756, %v760
        %v782 = vcombine.high %v756, %v760
        %v784 = vunpack.c.l.s4 1983009808
        %v785 = vunpack.c.0.s8 %v784
        %v786 = vlaneseq
        %v787 = vshrl.u32 %v786, 7
        %v788 = vsub.s32 %v785, %v787
        %v789 = vrot.slane %v781, %v788
        %v791 = vunpack.c.l.s4 1983009808
        %v792 = vunpack.c.0.s8 %v791
        %v793 = vlaneseq
        %v794 = vshrl.u32 %v793, 7
        %v795 = vsub.s32 %v792, %v794
        %v796 = vrot.slane %v782, %v795
        %v797 = vcombine.low %v773, %v789
        %v798 = vcombine.high %v773, %v789
        %v800 = vunpack.c.l.s4 1934713408
        %v801 = vunpack.c.0.s8 %v800
        %v802 = vlaneseq
        %v803 = vshrl.u32 %v802, 7
        %v804 = vsub.s32 %v801, %v803
        %v805 = vrot.slane %v797, %v804
        %v807 = vunpack.c.l.s4 1934713408
        %v808 = vunpack.c.0.s8 %v807
        %v809 = vlaneseq
        %v810 = vshrl.u32 %v809, 7
        %v811 = vsub.s32 %v808, %v810
        %v812 = vrot.slane %v798, %v811
        %v813 = vcombine.low %v780, %v796
        %v814 = vcombine.high %v780, %v796
        %v816 = vunpack.c.l.s4 1934713408
        %v817 = vunpack.c.0.s8 %v816
        %v818 = vlaneseq
        %v819 = vshrl.u32 %v818, 7
        %v820 = vsub.s32 %v817, %v819
        %v821 = vrot.slane %v813, %v820
        %v823 = vunpack.c.l.s4 1934713408
        %v824 = vunpack.c.0.s8 %v823
        %v825 = vlaneseq
        %v826 = vshrl.u32 %v825, 7
        %v827 = vsub.s32 %v824, %v826
        %v828 = vrot.slane %v814, %v827
        %v829 = vcombine.high %v805, 0.0
        %v830 = vcombine.high %v812, 0.0
        %v831 = vcombine.high %v821, 0.0
        %v832 = vcombine.high %v828, 0.0
        %834 = vrot.lane.b32.xlu0 %v829, 16
        %v835 = vpop.permute.xlu0 %834
        %838 = vrot.lane.b32.xlu0 %v812, 32
        %v839 = vpop.permute.xlu0 %838
        %842 = vrot.lane.b32.xlu0 %v830, 48
        %v843 = vpop.permute.xlu0 %842
        %846 = vrot.lane.b32.xlu0 %v821, 64
        %v847 = vpop.permute.xlu0 %846
        %850 = vrot.lane.b32.xlu0 %v831, 80
        %v851 = vpop.permute.xlu0 %850
        %854 = vrot.lane.b32.xlu0 %v828, 96
        %v855 = vpop.permute.xlu0 %854
        %858 = vrot.lane.b32.xlu0 %v832, 112
        %v859 = vpop.permute.xlu0 %858
        %v861 = vsel %vm381, %v805, %v835
        %v862 = vsel %vm383, %v861, %v839
        %v863 = vsel %vm385, %v862, %v843
        %v864 = vsel %vm387, %v863, %v847
        %v865 = vsel %vm389, %v864, %v851
        %v866 = vsel %vm391, %v865, %v855
        %v867 = vsel %vm393, %v866, %v859
        %868 = vrot.lane.b32.xlu0 %v636, 126
        %v869 = vpop.permute.xlu0 %868
        %870 = vrot.lane.b32.xlu0 %v639, 126
        %v871 = vpop.permute.xlu0 %870
        %872 = vrot.lane.b32.xlu0 %v642, 126
        %v873 = vpop.permute.xlu0 %872
        %874 = vrot.lane.b32.xlu0 %v645, 126
        %v875 = vpop.permute.xlu0 %874
        %v880 = vcombine.low %v869, %v873
        %v881 = vcombine.high %v869, %v873
        %v883 = vunpack.c.l.s4 1983009808
        %v884 = vunpack.c.0.s8 %v883
        %v885 = vlaneseq
        %v886 = vshrl.u32 %v885, 7
        %v887 = vsub.s32 %v884, %v886
        %v888 = vrot.slane %v880, %v887
        %v890 = vunpack.c.l.s4 1983009808
        %v891 = vunpack.c.0.s8 %v890
        %v892 = vlaneseq
        %v893 = vshrl.u32 %v892, 7
        %v894 = vsub.s32 %v891, %v893
        %v895 = vrot.slane %v881, %v894
        %v896 = vcombine.low %v871, %v875
        %v897 = vcombine.high %v871, %v875
        %v899 = vunpack.c.l.s4 1983009808
        %v900 = vunpack.c.0.s8 %v899
        %v901 = vlaneseq
        %v902 = vshrl.u32 %v901, 7
        %v903 = vsub.s32 %v900, %v902
        %v904 = vrot.slane %v896, %v903
        %v906 = vunpack.c.l.s4 1983009808
        %v907 = vunpack.c.0.s8 %v906
        %v908 = vlaneseq
        %v909 = vshrl.u32 %v908, 7
        %v910 = vsub.s32 %v907, %v909
        %v911 = vrot.slane %v897, %v910
        %v912 = vcombine.low %v888, %v904
        %v913 = vcombine.high %v888, %v904
        %v915 = vunpack.c.l.s4 1934713408
        %v916 = vunpack.c.0.s8 %v915
        %v917 = vlaneseq
        %v918 = vshrl.u32 %v917, 7
        %v919 = vsub.s32 %v916, %v918
        %v920 = vrot.slane %v912, %v919
        %v922 = vunpack.c.l.s4 1934713408
        %v923 = vunpack.c.0.s8 %v922
        %v924 = vlaneseq
        %v925 = vshrl.u32 %v924, 7
        %v926 = vsub.s32 %v923, %v925
        %v927 = vrot.slane %v913, %v926
        %v928 = vcombine.low %v895, %v911
        %v929 = vcombine.high %v895, %v911
        %v931 = vunpack.c.l.s4 1934713408
        %v932 = vunpack.c.0.s8 %v931
        %v933 = vlaneseq
        %v934 = vshrl.u32 %v933, 7
        %v935 = vsub.s32 %v932, %v934
        %v936 = vrot.slane %v928, %v935
        %v938 = vunpack.c.l.s4 1934713408
        %v939 = vunpack.c.0.s8 %v938
        %v940 = vlaneseq
        %v941 = vshrl.u32 %v940, 7
        %v942 = vsub.s32 %v939, %v941
        %v943 = vrot.slane %v929, %v942
        %v944 = vcombine.high %v920, 0.0
        %v945 = vcombine.high %v927, 0.0
        %v946 = vcombine.high %v936, 0.0
        %v947 = vcombine.high %v943, 0.0
        %949 = vrot.lane.b32.xlu0 %v944, 16
        %v950 = vpop.permute.xlu0 %949
        %953 = vrot.lane.b32.xlu0 %v927, 32
        %v954 = vpop.permute.xlu0 %953
        %957 = vrot.lane.b32.xlu0 %v945, 48
        %v958 = vpop.permute.xlu0 %957
        %961 = vrot.lane.b32.xlu0 %v936, 64
        %v962 = vpop.permute.xlu0 %961
        %965 = vrot.lane.b32.xlu0 %v946, 80
        %v966 = vpop.permute.xlu0 %965
        %969 = vrot.lane.b32.xlu0 %v943, 96
        %v970 = vpop.permute.xlu0 %969
        %973 = vrot.lane.b32.xlu0 %v947, 112
        %v974 = vpop.permute.xlu0 %973
        %v976 = vsel %vm381, %v920, %v950
        %v977 = vsel %vm383, %v976, %v954
        %v978 = vsel %vm385, %v977, %v958
        %v979 = vsel %vm387, %v978, %v962
        %v980 = vsel %vm389, %v979, %v966
        %v981 = vsel %vm391, %v980, %v970
        %v982 = vsel %vm393, %v981, %v974
        %vm983 = vcmask 1045504
        %v984 = vrot.slane %v277, 2
        %v985 = vrot.slane %v278, 2
        %v986 = vsel %vm983, %v984, %v985
        %v987 = vrot.slane %v279, 2
        %v988 = vrot.slane %v280, 2
        %v989 = vsel %vm983, %v987, %v988
        %v990 = vrot.slane %v281, 2
        %v991 = vrot.slane %v282, 2
        %v992 = vsel %vm983, %v990, %v991
        %v993 = vrot.slane %v283, 2
        %v994 = vrot.slane %v284, 2
        %v995 = vsel %vm983, %v993, %v994
        %v1000 = vcombine.low %v986, %v992
        %v1001 = vcombine.high %v986, %v992
        %v1003 = vunpack.c.l.s4 1983009808
        %v1004 = vunpack.c.0.s8 %v1003
        %v1005 = vlaneseq
        %v1006 = vshrl.u32 %v1005, 7
        %v1007 = vsub.s32 %v1004, %v1006
        %v1008 = vrot.slane %v1000, %v1007
        %v1010 = vunpack.c.l.s4 1983009808
        %v1011 = vunpack.c.0.s8 %v1010
        %v1012 = vlaneseq
        %v1013 = vshrl.u32 %v1012, 7
        %v1014 = vsub.s32 %v1011, %v1013
        %v1015 = vrot.slane %v1001, %v1014
        %v1016 = vcombine.low %v989, %v995
        %v1017 = vcombine.high %v989, %v995
        %v1019 = vunpack.c.l.s4 1983009808
        %v1020 = vunpack.c.0.s8 %v1019
        %v1021 = vlaneseq
        %v1022 = vshrl.u32 %v1021, 7
        %v1023 = vsub.s32 %v1020, %v1022
        %v1024 = vrot.slane %v1016, %v1023
        %v1026 = vunpack.c.l.s4 1983009808
        %v1027 = vunpack.c.0.s8 %v1026
        %v1028 = vlaneseq
        %v1029 = vshrl.u32 %v1028, 7
        %v1030 = vsub.s32 %v1027, %v1029
        %v1031 = vrot.slane %v1017, %v1030
        %v1032 = vcombine.low %v1008, %v1024
        %v1033 = vcombine.high %v1008, %v1024
        %v1035 = vunpack.c.l.s4 1934713408
        %v1036 = vunpack.c.0.s8 %v1035
        %v1037 = vlaneseq
        %v1038 = vshrl.u32 %v1037, 7
        %v1039 = vsub.s32 %v1036, %v1038
        %v1040 = vrot.slane %v1032, %v1039
        %v1042 = vunpack.c.l.s4 1934713408
        %v1043 = vunpack.c.0.s8 %v1042
        %v1044 = vlaneseq
        %v1045 = vshrl.u32 %v1044, 7
        %v1046 = vsub.s32 %v1043, %v1045
        %v1047 = vrot.slane %v1033, %v1046
        %v1048 = vcombine.low %v1015, %v1031
        %v1049 = vcombine.high %v1015, %v1031
        %v1051 = vunpack.c.l.s4 1934713408
        %v1052 = vunpack.c.0.s8 %v1051
        %v1053 = vlaneseq
        %v1054 = vshrl.u32 %v1053, 7
        %v1055 = vsub.s32 %v1052, %v1054
        %v1056 = vrot.slane %v1048, %v1055
        %v1058 = vunpack.c.l.s4 1934713408
        %v1059 = vunpack.c.0.s8 %v1058
        %v1060 = vlaneseq
        %v1061 = vshrl.u32 %v1060, 7
        %v1062 = vsub.s32 %v1059, %v1061
        %v1063 = vrot.slane %v1049, %v1062
        %v1064 = vcombine.high %v1040, 0.0
        %v1065 = vcombine.high %v1047, 0.0
        %v1066 = vcombine.high %v1056, 0.0
        %v1067 = vcombine.high %v1063, 0.0
        %1069 = vrot.lane.b32.xlu0 %v1064, 16
        %v1070 = vpop.permute.xlu0 %1069
        %1073 = vrot.lane.b32.xlu0 %v1047, 32
        %v1074 = vpop.permute.xlu0 %1073
        %1077 = vrot.lane.b32.xlu0 %v1065, 48
        %v1078 = vpop.permute.xlu0 %1077
        %1081 = vrot.lane.b32.xlu0 %v1056, 64
        %v1082 = vpop.permute.xlu0 %1081
        %1085 = vrot.lane.b32.xlu0 %v1066, 80
        %v1086 = vpop.permute.xlu0 %1085
        %1089 = vrot.lane.b32.xlu0 %v1063, 96
        %v1090 = vpop.permute.xlu0 %1089
        %1093 = vrot.lane.b32.xlu0 %v1067, 112
        %v1094 = vpop.permute.xlu0 %1093
        %v1096 = vsel %vm381, %v1040, %v1070
        %v1097 = vsel %vm383, %v1096, %v1074
        %v1098 = vsel %vm385, %v1097, %v1078
        %v1099 = vsel %vm387, %v1098, %v1082
        %v1100 = vsel %vm389, %v1099, %v1086
        %v1101 = vsel %vm391, %v1100, %v1090
        %v1102 = vsel %vm393, %v1101, %v1094
        %1103 = vrot.lane.b32.xlu0 %v986, 127
        %v1104 = vpop.permute.xlu0 %1103
        %1105 = vrot.lane.b32.xlu0 %v989, 127
        %v1106 = vpop.permute.xlu0 %1105
        %1107 = vrot.lane.b32.xlu0 %v992, 127
        %v1108 = vpop.permute.xlu0 %1107
        %1109 = vrot.lane.b32.xlu0 %v995, 127
        %v1110 = vpop.permute.xlu0 %1109
        %v1115 = vcombine.low %v1104, %v1108
        %v1116 = vcombine.high %v1104, %v1108
        %v1118 = vunpack.c.l.s4 1983009808
        %v1119 = vunpack.c.0.s8 %v1118
        %v1120 = vlaneseq
        %v1121 = vshrl.u32 %v1120, 7
        %v1122 = vsub.s32 %v1119, %v1121
        %v1123 = vrot.slane %v1115, %v1122
        %v1125 = vunpack.c.l.s4 1983009808
        %v1126 = vunpack.c.0.s8 %v1125
        %v1127 = vlaneseq
        %v1128 = vshrl.u32 %v1127, 7
        %v1129 = vsub.s32 %v1126, %v1128
        %v1130 = vrot.slane %v1116, %v1129
        %v1131 = vcombine.low %v1106, %v1110
        %v1132 = vcombine.high %v1106, %v1110
        %v1134 = vunpack.c.l.s4 1983009808
        %v1135 = vunpack.c.0.s8 %v1134
        %v1136 = vlaneseq
        %v1137 = vshrl.u32 %v1136, 7
        %v1138 = vsub.s32 %v1135, %v1137
        %v1139 = vrot.slane %v1131, %v1138
        %v1141 = vunpack.c.l.s4 1983009808
        %v1142 = vunpack.c.0.s8 %v1141
        %v1143 = vlaneseq
        %v1144 = vshrl.u32 %v1143, 7
        %v1145 = vsub.s32 %v1142, %v1144
        %v1146 = vrot.slane %v1132, %v1145
        %v1147 = vcombine.low %v1123, %v1139
        %v1148 = vcombine.high %v1123, %v1139
        %v1150 = vunpack.c.l.s4 1934713408
        %v1151 = vunpack.c.0.s8 %v1150
        %v1152 = vlaneseq
        %v1153 = vshrl.u32 %v1152, 7
        %v1154 = vsub.s32 %v1151, %v1153
        %v1155 = vrot.slane %v1147, %v1154
        %v1157 = vunpack.c.l.s4 1934713408
        %v1158 = vunpack.c.0.s8 %v1157
        %v1159 = vlaneseq
        %v1160 = vshrl.u32 %v1159, 7
        %v1161 = vsub.s32 %v1158, %v1160
        %v1162 = vrot.slane %v1148, %v1161
        %v1163 = vcombine.low %v1130, %v1146
        %v1164 = vcombine.high %v1130, %v1146
        %v1166 = vunpack.c.l.s4 1934713408
        %v1167 = vunpack.c.0.s8 %v1166
        %v1168 = vlaneseq
        %v1169 = vshrl.u32 %v1168, 7
        %v1170 = vsub.s32 %v1167, %v1169
        %v1171 = vrot.slane %v1163, %v1170
        %v1173 = vunpack.c.l.s4 1934713408
        %v1174 = vunpack.c.0.s8 %v1173
        %v1175 = vlaneseq
        %v1176 = vshrl.u32 %v1175, 7
        %v1177 = vsub.s32 %v1174, %v1176
        %v1178 = vrot.slane %v1164, %v1177
        %v1179 = vcombine.high %v1155, 0.0
        %v1180 = vcombine.high %v1162, 0.0
        %v1181 = vcombine.high %v1171, 0.0
        %v1182 = vcombine.high %v1178, 0.0
        %1184 = vrot.lane.b32.xlu0 %v1179, 16
        %v1185 = vpop.permute.xlu0 %1184
        %1188 = vrot.lane.b32.xlu0 %v1162, 32
        %v1189 = vpop.permute.xlu0 %1188
        %1192 = vrot.lane.b32.xlu0 %v1180, 48
        %v1193 = vpop.permute.xlu0 %1192
        %1196 = vrot.lane.b32.xlu0 %v1171, 64
        %v1197 = vpop.permute.xlu0 %1196
        %1200 = vrot.lane.b32.xlu0 %v1181, 80
        %v1201 = vpop.permute.xlu0 %1200
        %1204 = vrot.lane.b32.xlu0 %v1178, 96
        %v1205 = vpop.permute.xlu0 %1204
        %1208 = vrot.lane.b32.xlu0 %v1182, 112
        %v1209 = vpop.permute.xlu0 %1208
        %v1211 = vsel %vm381, %v1155, %v1185
        %v1212 = vsel %vm383, %v1211, %v1189
        %v1213 = vsel %vm385, %v1212, %v1193
        %v1214 = vsel %vm387, %v1213, %v1197
        %v1215 = vsel %vm389, %v1214, %v1201
        %v1216 = vsel %vm391, %v1215, %v1205
        %v1217 = vsel %vm393, %v1216, %v1209
        %1218 = vrot.lane.b32.xlu0 %v986, 126
        %v1219 = vpop.permute.xlu0 %1218
        %1220 = vrot.lane.b32.xlu0 %v989, 126
        %v1221 = vpop.permute.xlu0 %1220
        %1222 = vrot.lane.b32.xlu0 %v992, 126
        %v1223 = vpop.permute.xlu0 %1222
        %1224 = vrot.lane.b32.xlu0 %v995, 126
        %v1225 = vpop.permute.xlu0 %1224
        %v1230 = vcombine.low %v1219, %v1223
        %v1231 = vcombine.high %v1219, %v1223
        %v1233 = vunpack.c.l.s4 1983009808
        %v1234 = vunpack.c.0.s8 %v1233
        %v1235 = vlaneseq
        %v1236 = vshrl.u32 %v1235, 7
        %v1237 = vsub.s32 %v1234, %v1236
        %v1238 = vrot.slane %v1230, %v1237
        %v1240 = vunpack.c.l.s4 1983009808
        %v1241 = vunpack.c.0.s8 %v1240
        %v1242 = vlaneseq
        %v1243 = vshrl.u32 %v1242, 7
        %v1244 = vsub.s32 %v1241, %v1243
        %v1245 = vrot.slane %v1231, %v1244
        %v1246 = vcombine.low %v1221, %v1225
        %v1247 = vcombine.high %v1221, %v1225
        %v1249 = vunpack.c.l.s4 1983009808
        %v1250 = vunpack.c.0.s8 %v1249
        %v1251 = vlaneseq
        %v1252 = vshrl.u32 %v1251, 7
        %v1253 = vsub.s32 %v1250, %v1252
        %v1254 = vrot.slane %v1246, %v1253
        %v1256 = vunpack.c.l.s4 1983009808
        %v1257 = vunpack.c.0.s8 %v1256
        %v1258 = vlaneseq
        %v1259 = vshrl.u32 %v1258, 7
        %v1260 = vsub.s32 %v1257, %v1259
        %v1261 = vrot.slane %v1247, %v1260
        %v1262 = vcombine.low %v1238, %v1254
        %v1263 = vcombine.high %v1238, %v1254
        %v1265 = vunpack.c.l.s4 1934713408
        %v1266 = vunpack.c.0.s8 %v1265
        %v1267 = vlaneseq
        %v1268 = vshrl.u32 %v1267, 7
        %v1269 = vsub.s32 %v1266, %v1268
        %v1270 = vrot.slane %v1262, %v1269
        %v1272 = vunpack.c.l.s4 1934713408
        %v1273 = vunpack.c.0.s8 %v1272
        %v1274 = vlaneseq
        %v1275 = vshrl.u32 %v1274, 7
        %v1276 = vsub.s32 %v1273, %v1275
        %v1277 = vrot.slane %v1263, %v1276
        %v1278 = vcombine.low %v1245, %v1261
        %v1279 = vcombine.high %v1245, %v1261
        %v1281 = vunpack.c.l.s4 1934713408
        %v1282 = vunpack.c.0.s8 %v1281
        %v1283 = vlaneseq
        %v1284 = vshrl.u32 %v1283, 7
        %v1285 = vsub.s32 %v1282, %v1284
        %v1286 = vrot.slane %v1278, %v1285
        %v1288 = vunpack.c.l.s4 1934713408
        %v1289 = vunpack.c.0.s8 %v1288
        %v1290 = vlaneseq
        %v1291 = vshrl.u32 %v1290, 7
        %v1292 = vsub.s32 %v1289, %v1291
        %v1293 = vrot.slane %v1279, %v1292
        %v1294 = vcombine.high %v1270, 0.0
        %v1295 = vcombine.high %v1277, 0.0
        %v1296 = vcombine.high %v1286, 0.0
        %v1297 = vcombine.high %v1293, 0.0
        %1299 = vrot.lane.b32.xlu0 %v1294, 16
        %v1300 = vpop.permute.xlu0 %1299
        %1303 = vrot.lane.b32.xlu0 %v1277, 32
        %v1304 = vpop.permute.xlu0 %1303
        %1307 = vrot.lane.b32.xlu0 %v1295, 48
        %v1308 = vpop.permute.xlu0 %1307
        %1311 = vrot.lane.b32.xlu0 %v1286, 64
        %v1312 = vpop.permute.xlu0 %1311
        %1315 = vrot.lane.b32.xlu0 %v1296, 80
        %v1316 = vpop.permute.xlu0 %1315
        %1319 = vrot.lane.b32.xlu0 %v1293, 96
        %v1320 = vpop.permute.xlu0 %1319
        %1323 = vrot.lane.b32.xlu0 %v1297, 112
        %v1324 = vpop.permute.xlu0 %1323
        %v1326 = vsel %vm381, %v1270, %v1300
        %v1327 = vsel %vm383, %v1326, %v1304
        %v1328 = vsel %vm385, %v1327, %v1308
        %v1329 = vsel %vm387, %v1328, %v1312
        %v1330 = vsel %vm389, %v1329, %v1316
        %v1331 = vsel %vm391, %v1330, %v1320
        %v1332 = vsel %vm393, %v1331, %v1324
        %v1334 = vrot.slane %v513, 4
        %v1337 = vrot.slane %v752, 4
        %v1340 = vrot.slane %v982, 4
        %v1343 = vrot.slane %v1217, 4
        %vm1345 = vcmask 1043456
        %v1346 = vsel %vm1345, %v394, %v1334
        %v1347 = vsel %vm1345, %v628, %v1337
        %v1348 = vsel %vm1345, %v867, %v1340
        %v1349 = vsel %vm1345, %v1102, %v1343
        %v1350 = vld [vmem:[%s1] sm:$0xff]
        %vm1351 = vcmask 293888
        %v1353 = vsel %vm1351, %v1350, 0
        %v1356 = vsel %vm1345, %v1332, 0
        %1358 = vmatprep.subr.mxu0 0.0
        %v1359 = vand.u32 %v1346, 4294901760
        %1360 = vmatpush1.msra.mxu0 %v1359
        %1361 = vmatprep.subr.mxu0 0.0
        %v1362 = vand.u32 %v1347, 4294901760
        %1363 = vmatpush1.msra.mxu0 %v1362
        %1364 = vmatprep.subr.mxu0 0.0
        %v1365 = vand.u32 %v1348, 4294901760
        %1366 = vmatpush1.msra.mxu0 %v1365
        %1367 = vmatprep.subr.mxu0 0.0
        %v1368 = vand.u32 %v1349, 4294901760
        %1369 = vmatpush1.msra.mxu0 %v1368
        %1370 = vmatprep.subr.mxu0 0.0
        %v1371 = vand.u32 %v1356, 4294901760
        %1372 = vmatpush1.msra.mxu0 %v1371
        %1373 = vmatprep.subr.mxu0 0.0
        %1374 = vmatpush1.msra.mxu0 0.0
        %1375 = vmatprep.subr.mxu0 0.0
        %1376 = vmatpush1.msra.mxu0 0.0
        %1377 = vmatprep.subr.mxu0 0.0
        %1378 = vmatpush1.msra.mxu0 0.0
        %1379 = vmatprep.subr.mxu0 0.0
        %1380 = vmatpush1.msra.mxu0 0.0
        %1381 = vmatprep.subr.mxu0 0.0
        %1382 = vmatpush1.msra.mxu0 0.0
        %1383 = vmatprep.subr.mxu0 0.0
        %1384 = vmatpush1.msra.mxu0 0.0
        %1385 = vmatprep.subr.mxu0 0.0
        %1386 = vmatpush1.msra.mxu0 0.0
        %1387 = vmatprep.subr.mxu0 0.0
        %1388 = vmatpush1.msra.mxu0 0.0
        %1389 = vmatprep.subr.mxu0 0.0
        %1390 = vmatpush1.msra.mxu0 0.0
        %1391 = vmatprep.subr.mxu0 0.0
        %1392 = vmatpush1.msra.mxu0 0.0
        %1393 = vmatprep.subr.mxu0 0.0
        %1394 = vmatpush1.msra.mxu0 0.0
        %1395 = vmatprep.subr.mxu0 0.0
        %1396 = vmatpush1.msra.mxu0 0.0
        %1397 = vmatprep.subr.mxu0 0.0
        %1398 = vmatpush1.msra.mxu0 0.0
        %1399 = vmatprep.subr.mxu0 0.0
        %1400 = vmatpush1.msra.mxu0 0.0
        %1401 = vmatprep.subr.mxu0 0.0
        %1402 = vmatpush1.msra.mxu0 0.0
        %1403 = vmatprep.subr.mxu0 0.0
        %1404 = vmatpush1.msra.mxu0 0.0
        %1405 = vmatprep.subr.mxu0 0.0
        %1406 = vmatpush1.msra.mxu0 0.0
        %1407 = vmatprep.subr.mxu0 0.0
        %1408 = vmatpush1.msra.mxu0 0.0
        %1409 = vmatprep.subr.mxu0 0.0
        %1410 = vmatpush1.msra.mxu0 0.0
        %1411 = vmatprep.subr.mxu0 0.0
        %1412 = vmatpush1.msra.mxu0 0.0
        %1413 = vmatprep.subr.mxu0 0.0
        %1414 = vmatpush1.msra.mxu0 0.0
        %1415 = vmatprep.subr.mxu0 0.0
        %1416 = vmatpush1.msra.mxu0 0.0
        %1417 = vmatprep.subr.mxu0 0.0
        %1418 = vmatpush1.msra.mxu0 0.0
        %1419 = vmatprep.subr.mxu0 0.0
        %1420 = vmatpush1.msra.mxu0 0.0
        %1421 = vmatprep.subr.mxu0 0.0
        %1422 = vmatpush1.msra.mxu0 0.0
        %1423 = vmatprep.subr.mxu0 0.0
        %1424 = vmatpush1.msra.mxu0 0.0
        %1425 = vmatprep.subr.mxu0 0.0
        %1426 = vmatpush1.msra.mxu0 0.0
        %1427 = vmatprep.mubr.f32.mxu0 0.0
        %v1428 = vand.u32 %v1353, 4294901760
        %v1429 = vsub.f32 %v1353, %v1428
        %v1430 = vand.u32 %v1429, 4294901760
        %v1431 = vsub.f32 %v1429, %v1430
        %v1432 = vand.u32 %v1431, 4294901760
        %1433 = vmatmul.mubr.f32.gmra.mrb[0].mxu0 %v1432
        %v1434 = vpop.f32.mrb[0].mxu0
        %v1435 = vadd.f32 0.0, %v1434
        %v1436 = vpop.f32.mrb[0].mxu0
        %1437 = vdwg.mxu0
        %1438 = vmatprep.subr.mxu0 0.0
        %v1439 = vand.u32 %v1346, 4294901760
        %v1440 = vsub.f32 %v1346, %v1439
        %v1441 = vand.u32 %v1440, 4294901760
        %v1442 = vsub.f32 %v1440, %v1441
        %v1443 = vand.u32 %v1442, 4294901760
        %1444 = vmatpush1.msra.mxu0 %v1443
        %1445 = vmatprep.subr.mxu0 0.0
        %v1446 = vand.u32 %v1347, 4294901760
        %v1447 = vsub.f32 %v1347, %v1446
        %v1448 = vand.u32 %v1447, 4294901760
        %v1449 = vsub.f32 %v1447, %v1448
        %v1450 = vand.u32 %v1449, 4294901760
        %1451 = vmatpush1.msra.mxu0 %v1450
        %1452 = vmatprep.subr.mxu0 0.0
        %v1453 = vand.u32 %v1348, 4294901760
        %v1454 = vsub.f32 %v1348, %v1453
        %v1455 = vand.u32 %v1454, 4294901760
        %v1456 = vsub.f32 %v1454, %v1455
        %v1457 = vand.u32 %v1456, 4294901760
        %1458 = vmatpush1.msra.mxu0 %v1457
        %1459 = vmatprep.subr.mxu0 0.0
        %v1460 = vand.u32 %v1349, 4294901760
        %v1461 = vsub.f32 %v1349, %v1460
        %v1462 = vand.u32 %v1461, 4294901760
        %v1463 = vsub.f32 %v1461, %v1462
        %v1464 = vand.u32 %v1463, 4294901760
        %1465 = vmatpush1.msra.mxu0 %v1464
        %1466 = vmatprep.subr.mxu0 0.0
        %v1467 = vand.u32 %v1356, 4294901760
        %v1468 = vsub.f32 %v1356, %v1467
        %v1469 = vand.u32 %v1468, 4294901760
        %v1470 = vsub.f32 %v1468, %v1469
        %v1471 = vand.u32 %v1470, 4294901760
        %1472 = vmatpush1.msra.mxu0 %v1471
        %1473 = vmatprep.subr.mxu0 0.0
        %1474 = vmatpush1.msra.mxu0 0.0
        %1475 = vmatprep.subr.mxu0 0.0
        %1476 = vmatpush1.msra.mxu0 0.0
        %1477 = vmatprep.subr.mxu0 0.0
        %1478 = vmatpush1.msra.mxu0 0.0
        %1479 = vmatprep.subr.mxu0 0.0
        %1480 = vmatpush1.msra.mxu0 0.0
        %1481 = vmatprep.subr.mxu0 0.0
        %1482 = vmatpush1.msra.mxu0 0.0
        %1483 = vmatprep.subr.mxu0 0.0
        %1484 = vmatpush1.msra.mxu0 0.0
        %1485 = vmatprep.subr.mxu0 0.0
        %1486 = vmatpush1.msra.mxu0 0.0
        %1487 = vmatprep.subr.mxu0 0.0
        %1488 = vmatpush1.msra.mxu0 0.0
        %1489 = vmatprep.subr.mxu0 0.0
        %1490 = vmatpush1.msra.mxu0 0.0
        %1491 = vmatprep.subr.mxu0 0.0
        %1492 = vmatpush1.msra.mxu0 0.0
        %1493 = vmatprep.subr.mxu0 0.0
        %1494 = vmatpush1.msra.mxu0 0.0
        %1495 = vmatprep.subr.mxu0 0.0
        %1496 = vmatpush1.msra.mxu0 0.0
        %1497 = vmatprep.subr.mxu0 0.0
        %1498 = vmatpush1.msra.mxu0 0.0
        %1499 = vmatprep.subr.mxu0 0.0
        %1500 = vmatpush1.msra.mxu0 0.0
        %1501 = vmatprep.subr.mxu0 0.0
        %1502 = vmatpush1.msra.mxu0 0.0
        %1503 = vmatprep.subr.mxu0 0.0
        %1504 = vmatpush1.msra.mxu0 0.0
        %1505 = vmatprep.subr.mxu0 0.0
        %1506 = vmatpush1.msra.mxu0 0.0
        %1507 = vmatprep.subr.mxu0 0.0
        %1508 = vmatpush1.msra.mxu0 0.0
        %1509 = vmatprep.subr.mxu0 0.0
        %1510 = vmatpush1.msra.mxu0 0.0
        %1511 = vmatprep.subr.mxu0 0.0
        %1512 = vmatpush1.msra.mxu0 0.0
        %1513 = vmatprep.subr.mxu0 0.0
        %1514 = vmatpush1.msra.mxu0 0.0
        %1515 = vmatprep.subr.mxu0 0.0
        %1516 = vmatpush1.msra.mxu0 0.0
        %1517 = vmatprep.subr.mxu0 0.0
        %1518 = vmatpush1.msra.mxu0 0.0
        %1519 = vmatprep.subr.mxu0 0.0
        %1520 = vmatpush1.msra.mxu0 0.0
        %1521 = vmatprep.subr.mxu0 0.0
        %1522 = vmatpush1.msra.mxu0 0.0
        %1523 = vmatprep.subr.mxu0 0.0
        %1524 = vmatpush1.msra.mxu0 0.0
        %1525 = vmatprep.subr.mxu0 0.0
        %1526 = vmatpush1.msra.mxu0 0.0
        %1527 = vmatprep.mubr.f32.mxu0 0.0
        %v1528 = vand.u32 %v1353, 4294901760
        %1529 = vmatmul.mubr.f32.gmra.mrb[0].mxu0 %v1528
        %v1530 = vpop.f32.mrb[0].mxu0
        %v1531 = vadd.f32 %v1435, %v1530
        %v1532 = vpop.f32.mrb[0].mxu0
        %1533 = vdwg.mxu0
        %1534 = vmatprep.subr.mxu0 0.0
        %v1535 = vand.u32 %v1346, 4294901760
        %v1536 = vsub.f32 %v1346, %v1535
        %1537 = vmatpush1.msra.mxu0 %v1536
        %1538 = vmatprep.subr.mxu0 0.0
        %v1539 = vand.u32 %v1347, 4294901760
        %v1540 = vsub.f32 %v1347, %v1539
        %1541 = vmatpush1.msra.mxu0 %v1540
        %1542 = vmatprep.subr.mxu0 0.0
        %v1543 = vand.u32 %v1348, 4294901760
        %v1544 = vsub.f32 %v1348, %v1543
        %1545 = vmatpush1.msra.mxu0 %v1544
        %1546 = vmatprep.subr.mxu0 0.0
        %v1547 = vand.u32 %v1349, 4294901760
        %v1548 = vsub.f32 %v1349, %v1547
        %1549 = vmatpush1.msra.mxu0 %v1548
        %1550 = vmatprep.subr.mxu0 0.0
        %v1551 = vand.u32 %v1356, 4294901760
        %v1552 = vsub.f32 %v1356, %v1551
        %1553 = vmatpush1.msra.mxu0 %v1552
        %1554 = vmatprep.subr.mxu0 0.0
        %1555 = vmatpush1.msra.mxu0 0.0
        %1556 = vmatprep.subr.mxu0 0.0
        %1557 = vmatpush1.msra.mxu0 0.0
        %1558 = vmatprep.subr.mxu0 0.0
        %1559 = vmatpush1.msra.mxu0 0.0
        %1560 = vmatprep.subr.mxu0 0.0
        %1561 = vmatpush1.msra.mxu0 0.0
        %1562 = vmatprep.subr.mxu0 0.0
        %1563 = vmatpush1.msra.mxu0 0.0
        %1564 = vmatprep.subr.mxu0 0.0
        %1565 = vmatpush1.msra.mxu0 0.0
        %1566 = vmatprep.subr.mxu0 0.0
        %1567 = vmatpush1.msra.mxu0 0.0
        %1568 = vmatprep.subr.mxu0 0.0
        %1569 = vmatpush1.msra.mxu0 0.0
        %1570 = vmatprep.subr.mxu0 0.0
        %1571 = vmatpush1.msra.mxu0 0.0
        %1572 = vmatprep.subr.mxu0 0.0
        %1573 = vmatpush1.msra.mxu0 0.0
        %1574 = vmatprep.subr.mxu0 0.0
        %1575 = vmatpush1.msra.mxu0 0.0
        %1576 = vmatprep.subr.mxu0 0.0
        %1577 = vmatpush1.msra.mxu0 0.0
        %1578 = vmatprep.subr.mxu0 0.0
        %1579 = vmatpush1.msra.mxu0 0.0
        %1580 = vmatprep.subr.mxu0 0.0
        %1581 = vmatpush1.msra.mxu0 0.0
        %1582 = vmatprep.subr.mxu0 0.0
        %1583 = vmatpush1.msra.mxu0 0.0
        %1584 = vmatprep.subr.mxu0 0.0
        %1585 = vmatpush1.msra.mxu0 0.0
        %1586 = vmatprep.subr.mxu0 0.0
        %1587 = vmatpush1.msra.mxu0 0.0
        %1588 = vmatprep.subr.mxu0 0.0
        %1589 = vmatpush1.msra.mxu0 0.0
        %1590 = vmatprep.subr.mxu0 0.0
        %1591 = vmatpush1.msra.mxu0 0.0
        %1592 = vmatprep.subr.mxu0 0.0
        %1593 = vmatpush1.msra.mxu0 0.0
        %1594 = vmatprep.subr.mxu0 0.0
        %1595 = vmatpush1.msra.mxu0 0.0
        %1596 = vmatprep.subr.mxu0 0.0
        %1597 = vmatpush1.msra.mxu0 0.0
        %1598 = vmatprep.subr.mxu0 0.0
        %1599 = vmatpush1.msra.mxu0 0.0
        %1600 = vmatprep.subr.mxu0 0.0
        %1601 = vmatpush1.msra.mxu0 0.0
        %1602 = vmatprep.subr.mxu0 0.0
        %1603 = vmatpush1.msra.mxu0 0.0
        %1604 = vmatprep.subr.mxu0 0.0
        %1605 = vmatpush1.msra.mxu0 0.0
        %1606 = vmatprep.subr.mxu0 0.0
        %1607 = vmatpush1.msra.mxu0 0.0
        %1608 = vmatprep.mubr.f32.mxu0 0.0
        %v1609 = vand.u32 %v1353, 4294901760
        %v1610 = vsub.f32 %v1353, %v1609
        %1611 = vmatmul.mubr.f32.gmra.mrb[0].mxu0 %v1610
        %v1612 = vpop.f32.mrb[0].mxu0
        %v1613 = vadd.f32 %v1531, %v1612
        %v1614 = vpop.f32.mrb[0].mxu0
        %1615 = vdwg.mxu0
        %1616 = vmatprep.subr.mxu0 0.0
        %v1617 = vand.u32 %v1346, 4294901760
        %1618 = vmatpush1.msra.mxu0 %v1617
        %1619 = vmatprep.subr.mxu0 0.0
        %v1620 = vand.u32 %v1347, 4294901760
        %1621 = vmatpush1.msra.mxu0 %v1620
        %1622 = vmatprep.subr.mxu0 0.0
        %v1623 = vand.u32 %v1348, 4294901760
        %1624 = vmatpush1.msra.mxu0 %v1623
        %1625 = vmatprep.subr.mxu0 0.0
        %v1626 = vand.u32 %v1349, 4294901760
        %1627 = vmatpush1.msra.mxu0 %v1626
        %1628 = vmatprep.subr.mxu0 0.0
        %v1629 = vand.u32 %v1356, 4294901760
        %1630 = vmatpush1.msra.mxu0 %v1629
        %1631 = vmatprep.subr.mxu0 0.0
        %1632 = vmatpush1.msra.mxu0 0.0
        %1633 = vmatprep.subr.mxu0 0.0
        %1634 = vmatpush1.msra.mxu0 0.0
        %1635 = vmatprep.subr.mxu0 0.0
        %1636 = vmatpush1.msra.mxu0 0.0
        %1637 = vmatprep.subr.mxu0 0.0
        %1638 = vmatpush1.msra.mxu0 0.0
        %1639 = vmatprep.subr.mxu0 0.0
        %1640 = vmatpush1.msra.mxu0 0.0
        %1641 = vmatprep.subr.mxu0 0.0
        %1642 = vmatpush1.msra.mxu0 0.0
        %1643 = vmatprep.subr.mxu0 0.0
        %1644 = vmatpush1.msra.mxu0 0.0
        %1645 = vmatprep.subr.mxu0 0.0
        %1646 = vmatpush1.msra.mxu0 0.0
        %1647 = vmatprep.subr.mxu0 0.0
        %1648 = vmatpush1.msra.mxu0 0.0
        %1649 = vmatprep.subr.mxu0 0.0
        %1650 = vmatpush1.msra.mxu0 0.0
        %1651 = vmatprep.subr.mxu0 0.0
        %1652 = vmatpush1.msra.mxu0 0.0
        %1653 = vmatprep.subr.mxu0 0.0
        %1654 = vmatpush1.msra.mxu0 0.0
        %1655 = vmatprep.subr.mxu0 0.0
        %1656 = vmatpush1.msra.mxu0 0.0
        %1657 = vmatprep.subr.mxu0 0.0
        %1658 = vmatpush1.msra.mxu0 0.0
        %1659 = vmatprep.subr.mxu0 0.0
        %1660 = vmatpush1.msra.mxu0 0.0
        %1661 = vmatprep.subr.mxu0 0.0
        %1662 = vmatpush1.msra.mxu0 0.0
        %1663 = vmatprep.subr.mxu0 0.0
        %1664 = vmatpush1.msra.mxu0 0.0
        %1665 = vmatprep.subr.mxu0 0.0
        %1666 = vmatpush1.msra.mxu0 0.0
        %1667 = vmatprep.subr.mxu0 0.0
        %1668 = vmatpush1.msra.mxu0 0.0
        %1669 = vmatprep.subr.mxu0 0.0
        %1670 = vmatpush1.msra.mxu0 0.0
        %1671 = vmatprep.subr.mxu0 0.0
        %1672 = vmatpush1.msra.mxu0 0.0
        %1673 = vmatprep.subr.mxu0 0.0
        %1674 = vmatpush1.msra.mxu0 0.0
        %1675 = vmatprep.subr.mxu0 0.0
        %1676 = vmatpush1.msra.mxu0 0.0
        %1677 = vmatprep.subr.mxu0 0.0
        %1678 = vmatpush1.msra.mxu0 0.0
        %1679 = vmatprep.subr.mxu0 0.0
        %1680 = vmatpush1.msra.mxu0 0.0
        %1681 = vmatprep.subr.mxu0 0.0
        %1682 = vmatpush1.msra.mxu0 0.0
        %1683 = vmatprep.subr.mxu0 0.0
        %1684 = vmatpush1.msra.mxu0 0.0
        %1685 = vmatprep.mubr.f32.mxu0 0.0
        %v1686 = vand.u32 %v1353, 4294901760
        %v1687 = vsub.f32 %v1353, %v1686
        %v1688 = vand.u32 %v1687, 4294901760
        %1689 = vmatmul.mubr.f32.gmra.mrb[0].mxu0 %v1688
        %v1690 = vpop.f32.mrb[0].mxu0
        %v1691 = vadd.f32 %v1613, %v1690
        %v1692 = vpop.f32.mrb[0].mxu0
        %1693 = vdwg.mxu0
        %1694 = vmatprep.subr.mxu0 0.0
        %v1695 = vand.u32 %v1346, 4294901760
        %v1696 = vsub.f32 %v1346, %v1695
        %v1697 = vand.u32 %v1696, 4294901760
        %1698 = vmatpush1.msra.mxu0 %v1697
        %1699 = vmatprep.subr.mxu0 0.0
        %v1700 = vand.u32 %v1347, 4294901760
        %v1701 = vsub.f32 %v1347, %v1700
        %v1702 = vand.u32 %v1701, 4294901760
        %1703 = vmatpush1.msra.mxu0 %v1702
        %1704 = vmatprep.subr.mxu0 0.0
        %v1705 = vand.u32 %v1348, 4294901760
        %v1706 = vsub.f32 %v1348, %v1705
        %v1707 = vand.u32 %v1706, 4294901760
        %1708 = vmatpush1.msra.mxu0 %v1707
        %1709 = vmatprep.subr.mxu0 0.0
        %v1710 = vand.u32 %v1349, 4294901760
        %v1711 = vsub.f32 %v1349, %v1710
        %v1712 = vand.u32 %v1711, 4294901760
        %1713 = vmatpush1.msra.mxu0 %v1712
        %1714 = vmatprep.subr.mxu0 0.0
        %v1715 = vand.u32 %v1356, 4294901760
        %v1716 = vsub.f32 %v1356, %v1715
        %v1717 = vand.u32 %v1716, 4294901760
        %1718 = vmatpush1.msra.mxu0 %v1717
        %1719 = vmatprep.subr.mxu0 0.0
        %1720 = vmatpush1.msra.mxu0 0.0
        %1721 = vmatprep.subr.mxu0 0.0
        %1722 = vmatpush1.msra.mxu0 0.0
        %1723 = vmatprep.subr.mxu0 0.0
        %1724 = vmatpush1.msra.mxu0 0.0
        %1725 = vmatprep.subr.mxu0 0.0
        %1726 = vmatpush1.msra.mxu0 0.0
        %1727 = vmatprep.subr.mxu0 0.0
        %1728 = vmatpush1.msra.mxu0 0.0
        %1729 = vmatprep.subr.mxu0 0.0
        %1730 = vmatpush1.msra.mxu0 0.0
        %1731 = vmatprep.subr.mxu0 0.0
        %1732 = vmatpush1.msra.mxu0 0.0
        %1733 = vmatprep.subr.mxu0 0.0
        %1734 = vmatpush1.msra.mxu0 0.0
        %1735 = vmatprep.subr.mxu0 0.0
        %1736 = vmatpush1.msra.mxu0 0.0
        %1737 = vmatprep.subr.mxu0 0.0
        %1738 = vmatpush1.msra.mxu0 0.0
        %1739 = vmatprep.subr.mxu0 0.0
        %1740 = vmatpush1.msra.mxu0 0.0
        %1741 = vmatprep.subr.mxu0 0.0
        %1742 = vmatpush1.msra.mxu0 0.0
        %1743 = vmatprep.subr.mxu0 0.0
        %1744 = vmatpush1.msra.mxu0 0.0
        %1745 = vmatprep.subr.mxu0 0.0
        %1746 = vmatpush1.msra.mxu0 0.0
        %1747 = vmatprep.subr.mxu0 0.0
        %1748 = vmatpush1.msra.mxu0 0.0
        %1749 = vmatprep.subr.mxu0 0.0
        %1750 = vmatpush1.msra.mxu0 0.0
        %1751 = vmatprep.subr.mxu0 0.0
        %1752 = vmatpush1.msra.mxu0 0.0
        %1753 = vmatprep.subr.mxu0 0.0
        %1754 = vmatpush1.msra.mxu0 0.0
        %1755 = vmatprep.subr.mxu0 0.0
        %1756 = vmatpush1.msra.mxu0 0.0
        %1757 = vmatprep.subr.mxu0 0.0
        %1758 = vmatpush1.msra.mxu0 0.0
        %1759 = vmatprep.subr.mxu0 0.0
        %1760 = vmatpush1.msra.mxu0 0.0
        %1761 = vmatprep.subr.mxu0 0.0
        %1762 = vmatpush1.msra.mxu0 0.0
        %1763 = vmatprep.subr.mxu0 0.0
        %1764 = vmatpush1.msra.mxu0 0.0
        %1765 = vmatprep.subr.mxu0 0.0
        %1766 = vmatpush1.msra.mxu0 0.0
        %1767 = vmatprep.subr.mxu0 0.0
        %1768 = vmatpush1.msra.mxu0 0.0
        %1769 = vmatprep.subr.mxu0 0.0
        %1770 = vmatpush1.msra.mxu0 0.0
        %1771 = vmatprep.subr.mxu0 0.0
        %1772 = vmatpush1.msra.mxu0 0.0
        %1773 = vmatprep.mubr.f32.mxu0 0.0
        %v1774 = vand.u32 %v1353, 4294901760
        %1775 = vmatmul.mubr.f32.gmra.mrb[0].mxu0 %v1774
        %v1776 = vpop.f32.mrb[0].mxu0
        %v1777 = vadd.f32 %v1691, %v1776
        %v1778 = vpop.f32.mrb[0].mxu0
        %1779 = vdwg.mxu0
        %1780 = vmatprep.subr.mxu0 0.0
        %v1781 = vand.u32 %v1346, 4294901760
        %1782 = vmatpush1.msra.mxu0 %v1781
        %1783 = vmatprep.subr.mxu0 0.0
        %v1784 = vand.u32 %v1347, 4294901760
        %1785 = vmatpush1.msra.mxu0 %v1784
        %1786 = vmatprep.subr.mxu0 0.0
        %v1787 = vand.u32 %v1348, 4294901760
        %1788 = vmatpush1.msra.mxu0 %v1787
        %1789 = vmatprep.subr.mxu0 0.0
        %v1790 = vand.u32 %v1349, 4294901760
        %1791 = vmatpush1.msra.mxu0 %v1790
        %1792 = vmatprep.subr.mxu0 0.0
        %v1793 = vand.u32 %v1356, 4294901760
        %1794 = vmatpush1.msra.mxu0 %v1793
        %1795 = vmatprep.subr.mxu0 0.0
        %1796 = vmatpush1.msra.mxu0 0.0
        %1797 = vmatprep.subr.mxu0 0.0
        %1798 = vmatpush1.msra.mxu0 0.0
        %1799 = vmatprep.subr.mxu0 0.0
        %1800 = vmatpush1.msra.mxu0 0.0
        %1801 = vmatprep.subr.mxu0 0.0
        %1802 = vmatpush1.msra.mxu0 0.0
        %1803 = vmatprep.subr.mxu0 0.0
        %1804 = vmatpush1.msra.mxu0 0.0
        %1805 = vmatprep.subr.mxu0 0.0
        %1806 = vmatpush1.msra.mxu0 0.0
        %1807 = vmatprep.subr.mxu0 0.0
        %1808 = vmatpush1.msra.mxu0 0.0
        %1809 = vmatprep.subr.mxu0 0.0
        %1810 = vmatpush1.msra.mxu0 0.0
        %1811 = vmatprep.subr.mxu0 0.0
        %1812 = vmatpush1.msra.mxu0 0.0
        %1813 = vmatprep.subr.mxu0 0.0
        %1814 = vmatpush1.msra.mxu0 0.0
        %1815 = vmatprep.subr.mxu0 0.0
        %1816 = vmatpush1.msra.mxu0 0.0
        %1817 = vmatprep.subr.mxu0 0.0
        %1818 = vmatpush1.msra.mxu0 0.0
        %1819 = vmatprep.subr.mxu0 0.0
        %1820 = vmatpush1.msra.mxu0 0.0
        %1821 = vmatprep.subr.mxu0 0.0
        %1822 = vmatpush1.msra.mxu0 0.0
        %1823 = vmatprep.subr.mxu0 0.0
        %1824 = vmatpush1.msra.mxu0 0.0
        %1825 = vmatprep.subr.mxu0 0.0
        %1826 = vmatpush1.msra.mxu0 0.0
        %1827 = vmatprep.subr.mxu0 0.0
        %1828 = vmatpush1.msra.mxu0 0.0
        %1829 = vmatprep.subr.mxu0 0.0
        %1830 = vmatpush1.msra.mxu0 0.0
        %1831 = vmatprep.subr.mxu0 0.0
        %1832 = vmatpush1.msra.mxu0 0.0
        %1833 = vmatprep.subr.mxu0 0.0
        %1834 = vmatpush1.msra.mxu0 0.0
        %1835 = vmatprep.subr.mxu0 0.0
        %1836 = vmatpush1.msra.mxu0 0.0
        %1837 = vmatprep.subr.mxu0 0.0
        %1838 = vmatpush1.msra.mxu0 0.0
        %1839 = vmatprep.subr.mxu0 0.0
        %1840 = vmatpush1.msra.mxu0 0.0
        %1841 = vmatprep.subr.mxu0 0.0
        %1842 = vmatpush1.msra.mxu0 0.0
        %1843 = vmatprep.subr.mxu0 0.0
        %1844 = vmatpush1.msra.mxu0 0.0
        %1845 = vmatprep.subr.mxu0 0.0
        %1846 = vmatpush1.msra.mxu0 0.0
        %1847 = vmatprep.subr.mxu0 0.0
        %1848 = vmatpush1.msra.mxu0 0.0
        %1849 = vmatprep.mubr.f32.mxu0 0.0
        %v1850 = vand.u32 %v1353, 4294901760
        %1851 = vmatmul.mubr.f32.gmra.mrb[0].mxu0 %v1850
        %v1852 = vpop.f32.mrb[0].mxu0
        %v1853 = vadd.f32 %v1777, %v1852
        %v1854 = vpop.f32.mrb[0].mxu0
        %1855 = vdwg.mxu0
        %1856 = vst [vmem:[#allocation2] sm:$0xff] %v1853
        %v1857 = vld [vmem:[#allocation2] sm:$0xff]
        %v1858 = vld [vmem:[%s2] sm:$0xff]
        %1860 = vset.pattern.permute.xlu0 0
        %1861 = vperm.xlu0 %1860, %v1858
        %v1862 = vpop.permute.xlu0 %1861
        %v1864 = vmul.f32 %v1857, %v1862
        %v1865 = vld [vmem:[%s3] sm:$0xff]
        %1867 = vset.pattern.permute.xlu0 0
        %1868 = vperm.xlu0 %1867, %v1865
        %v1869 = vpop.permute.xlu0 %1868
        %v1871 = vadd.f32 %v1864, %v1869
        %v1872 = vmax.f32 %v1871, 0.0
        %1873 = vst [vmem:[%s276] sm:$0xff] %v1872
        %s1874 = sand.u32 %s131, 1
        %s1875 = scalar_lea.sflag [#allocation5], %s1874
        %s1876 = sand.u32 %s131, 1
        %s1877 = smul.addr %s1876, 8
        %s1878 = scalar_lea.vmem [#allocation4], %s1877
        // Predicated region
        $region75: #{tpu_custom_call.1} parent=69 // pred_check
          %p1879 = pneg %p141
        $region76: #{tpu_custom_call.1} parent=69 // pred_check_branch
          %1881 = sbr.rel (%p1879) target = $region78
        $region77: #{tpu_custom_call.1} parent=69 // pred_region
          %s1883 = ssub.s32 128, 128
          %1884 = vsyncadd %s1875, %s1883
          %s1885 = smul.addr %s22, 2
          %s1886 = sadd.s32 %s23, %s1885
          %s1887 = smul.addr %s1886, 128
          %s1888 = scalar_lea.hbm %s4, %s1887
          %s1890 = sshll.u32 %s1878, 4
          %s1891 = int_to_ptr.vmem [resolvable:$true] %s1890
          %1893 = dma.vmem_to_hbm [thread:$0]  %s1891, 128, %s1888, %s1875
        $region78: #{tpu_custom_call.1} parent=69 // pred_fallthru
          _
      $region70: #{tpu_custom_call.1} parent=5 // pred_fallthru
        _
      %p1894 = scmp.le.s32.totalorder 2, %s13
      // Predicated region
      $region79: #{tpu_custom_call.1} parent=5 // pred_check
        %p1895 = pneg %p1894
      $region80: #{tpu_custom_call.1} parent=5 // pred_check_branch
        %1897 = sbr.rel (%p1895) target = $region82
      $region81: #{tpu_custom_call.1} parent=5 // pred_region
        %s1898 = ssub.s32 %s13, 2
        // Predicated region
        $region83: #{tpu_custom_call.1} parent=81 // pred_check
          %p1899 = pneg %p147
        $region84: #{tpu_custom_call.1} parent=81 // pred_check_branch
          %1901 = sbr.rel (%p1899) target = $region86
        $region85: #{tpu_custom_call.1} parent=81 // pred_region
          %s1902 = sand.u32 %s132, 1
          %s1903 = scalar_lea.sflag [#allocation5], %s1902
          %s1904 = sand.u32 %s132, 1
          %s1905 = smul.addr %s1904, 8
          %s1906 = scalar_lea.vmem [#allocation4], %s1905
          %1907 = dma.done %s1903, 128
        $region86: #{tpu_custom_call.1} parent=81 // pred_fallthru
          _
      $region82: #{tpu_custom_call.1} parent=5 // pred_fallthru
        _
    $region6: #{tpu_custom_call.1} parent=1 // loop_footer
      %s17 = sadd.s32 1, %s13
    $region7: #{tpu_custom_call.1} parent=1 // loop_footer_branch
      %12 = sbr.rel target = $region3
    $region8: #{tpu_custom_call.1} parent=1 // loop_exit
      _
    %1908 = vsyncpa [#allocation5], 1
    %s1909 = scalar_lea.sflag [#allocation5], 1
    %1910 = vsyncpa %s1909, 1

</llo_original>
